<compile_context>
chip_gen: v5e
topology: v5e:2x2
jax: 0.10.0
libtpu: 0.0.40
codegen_flags: <defaults>
</compile_context>

<pallas_src>
import functools

import jax
import jax.numpy as jnp
from jax.experimental import pallas as pl
from jax.experimental.pallas import tpu as pltpu


def _attn_kernel(
    hs_ref,        # (1, TQ, H)        hidden_states tile
    k_ref,         # (1, Skv_pad, H)   pre-projected keys (zero-padded)
    v_ref,         # (1, Skv_pad, H)   pre-projected values (zero-padded)
    wq_ref,        # (H, H)            fused to_q weight (LoRA + attn_scale folded)
    wo_ref,        # (H, H)            to_out[0] weight (in, out)
    bo_ref,        # (1, H)            to_out[0] bias
    out_ref,       # (1, TQ, H)
    attn_out_ref,  # (TQ, H)           VMEM scratch for the per-head outputs
    *,
    heads,
    head_dim,
    skv,
):
    f32 = jnp.float32
    cdt = hs_ref.dtype  # MXU operand dtype = input dtype (bf16 stays bf16)
    dn_nt = (((1,), (0,)), ((), ()))  # x's last dim  x  W's first dim
    dn_tt = (((1,), (1,)), ((), ()))  # contract last dims of both (no .T)

    hs = hs_ref[0]   # (TQ, H)
    k = k_ref[0]     # (Skv_pad, H)
    v = v_ref[0]     # (Skv_pad, H)
    skv_pad = k.shape[0]

    # Query projection (LoRA correction and attn_scale already folded in).
    q = jax.lax.dot_general(hs, wq_ref[...], dn_nt,
                            preferred_element_type=f32).astype(cdt)   # (TQ, H)

    # Additive bias masking the zero-padded keys (shapes are static).
    # TODO(synk): user-provided attention_mask is not supported (None-only path).
    if skv_pad > skv:
        key_idx = jax.lax.broadcasted_iota(jnp.int32, (1, skv_pad), 1)
        pad_bias = jnp.where(key_idx < skv, 0.0, -1e30).astype(f32)
    else:
        pad_bias = None

    # Per-head attention; each head writes its pv slice into VMEM scratch so
    # the output projection below runs once with a full K=H contraction.
    # TODO(synk): for very large head counts, switch to lax.fori_loop with a
    # two-head (128-lane) inner slice to bound code size / keep stores aligned.
    for h in range(heads):
        lo = h * head_dim
        hi = lo + head_dim
        s = jax.lax.dot_general(q[:, lo:hi], k[:, lo:hi], dn_tt,
                                preferred_element_type=f32)            # (TQ, Skv_pad)
        if pad_bias is not None:
            s = s + pad_bias
        s = s - jnp.max(s, axis=-1, keepdims=True)
        p = jnp.exp(s)
        l = jnp.sum(p, axis=-1, keepdims=True)                         # (TQ, 1)
        pv = jnp.dot(p.astype(cdt), v[:, lo:hi],
                     preferred_element_type=f32)                       # (TQ, D)
        pv = pv * pl.reciprocal(l, approx=True)    # deferred softmax normalization
        attn_out_ref[:, lo:hi] = pv.astype(attn_out_ref.dtype)

    # to_out[0]: single K=H matmul + bias.  to_out[1] is Dropout -> identity.
    out = jax.lax.dot_general(attn_out_ref[...], wo_ref[...], dn_nt,
                              preferred_element_type=f32)              # (TQ, H)
    out_ref[0] = (out + bo_ref[...].astype(f32)).astype(out_ref.dtype)


def _vmem_capacity_bytes():
    try:
        return int(pltpu.get_tpu_info().vmem_capacity_bytes)
    except Exception:
        return 128 * 1024 * 1024


def _choose_q_tile(sq, vmem_cap):
    """Largest multiple-of-16 divisor of sq below a generation-aware ceiling."""
    max_tile = 512 if vmem_cap <= 64 * 1024 * 1024 else 1024   # v7x vs v5e/v6e
    if sq <= max_tile:
        return sq
    for step in (16, 8):   # prefer bf16-sublane-friendly multiples of 16
        t = (max_tile // step) * step
        while t >= step:
            if sq % t == 0:
                return t
            t -= step
    return sq


def _estimate_vmem_bytes(tq, skv_pad, H, itemsize, head_dim):
    weights = (2 * H * H + H) * itemsize            # wq_eff, wo (single buffer), bo
    acts = 2 * 2 * tq * H * itemsize                # hs + out, double-buffered
    kv = 2 * 2 * skv_pad * H * itemsize             # k, v, double-buffered
    scratch = tq * H * itemsize                     # attn_out
    interm = 4 * (2 * tq * H + 2 * tq * skv_pad + tq * head_dim)  # f32 temporaries
    return int(1.5 * (weights + acts + kv + scratch + interm))


def _const_spec(shape, single_buffer):
    index_map = lambda b, q: (0,) * len(shape)
    if single_buffer:
        return pl.BlockSpec(shape, index_map, pipeline_mode=pl.Buffered(1))
    return pl.BlockSpec(shape, index_map)


def lora_ip_attn_processor(
    hidden_states,          # (B, Sq, H)
    encoder_hidden_states,  # (B, Skv, C)
    params,                 # dict of weights, see __main__
    *,
    heads,
    scale=1.0,              # forward() arg
    module_scale=1.0,       # self.scale from __init__
    q_tile=None,
    vmem_limit_bytes=None,
):
    B, Sq, H = hidden_states.shape
    _, Skv, C = encoder_hidden_states.shape
    if H % heads != 0:
        raise ValueError("hidden_size must be divisible by heads")
    if H != C:
        # Same constraint as the PyTorch module: key/value (H-wide) are fed
        # back through the C-wide LoRA 'down' projections.
        raise ValueError("hidden_size must equal cross_attention_dim")
    head_dim = H // heads
    lora_scale = float(scale * module_scale)
    attn_scale = float(head_dim) ** -0.5
    dtype = hidden_states.dtype
    f32 = jnp.float32

    # ---- Fold the LoRA corrections into effective weights (exact: everything
    # before the softmax is linear) and fold attn_scale into W_q.
    # TODO(synk): for bf16 inputs with large lora_scale, keep wq_eff in f32 if
    # the quantized rank-R correction drifts beyond tolerance.
    qd, qu = params["q_down"].astype(f32), params["q_up"].astype(f32)
    kd, ku = params["k_down"].astype(f32), params["k_up"].astype(f32)
    vd, vu = params["v_down"].astype(f32), params["v_up"].astype(f32)
    eye = jnp.eye(H, dtype=f32)
    wq_eff = (params["wq"].astype(f32) @ (eye + lora_scale * (qd @ qu))) * attn_scale
    wk_eff = (kd @ ku) @ (eye + lora_scale * (kd @ ku))
    wv_eff = (vd @ vu) @ (eye + lora_scale * (vd @ vu))
    wq_eff = wq_eff.astype(dtype)
    wo = params["wo"].astype(dtype)
    bo = params["bo"].astype(dtype)

    # ---- Hoist the K/V projections (once per batch instead of per query tile)
    # and zero-pad Skv to a lane-dense multiple of 128.
    ehs = encoder_hidden_states.astype(f32)
    k_all = (ehs @ wk_eff).astype(dtype)            # (B, Skv, H)
    v_all = (ehs @ wv_eff).astype(dtype)            # (B, Skv, H)
    skv_pad = ((Skv + 127) // 128) * 128
    if skv_pad != Skv:
        pad = ((0, 0), (0, skv_pad - Skv), (0, 0))
        k_all = jnp.pad(k_all, pad)
        v_all = jnp.pad(v_all, pad)

    vmem_cap = _vmem_capacity_bytes()
    tq = int(q_tile) if q_tile is not None else _choose_q_tile(Sq, vmem_cap)
    if Sq % tq != 0:
        raise ValueError("q_tile must divide the query sequence length")
    grid = (B, Sq // tq)

    if vmem_limit_bytes is None:
        est = _estimate_vmem_bytes(tq, skv_pad, H, jnp.dtype(dtype).itemsize, head_dim)
        vmem_limit_bytes = min(max(est, 32 * 1024 * 1024), int(vmem_cap * 0.85))

    kernel = functools.partial(
        _attn_kernel, heads=heads, head_dim=head_dim, skv=Skv
    )

    def build(single_buffer_weights):
        in_specs = [
            pl.BlockSpec((1, tq, H), lambda b, q: (b, q, 0)),        # hidden_states
            pl.BlockSpec((1, skv_pad, H), lambda b, q: (b, 0, 0)),   # keys
            pl.BlockSpec((1, skv_pad, H), lambda b, q: (b, 0, 0)),   # values
            _const_spec((H, H), single_buffer_weights),              # wq_eff
            _const_spec((H, H), single_buffer_weights),              # wo
            _const_spec((1, H), single_buffer_weights),              # bo
        ]
        out_specs = pl.BlockSpec((1, tq, H), lambda b, q: (b, q, 0))
        return pl.pallas_call(
            kernel,
            out_shape=jax.ShapeDtypeStruct((B, Sq, H), dtype),
            grid_spec=pltpu.PrefetchScalarGridSpec(
                num_scalar_prefetch=0,
                grid=grid,
                in_specs=in_specs,
                out_specs=out_specs,
                scratch_shapes=[pltpu.VMEM((tq, H), dtype)],
            ),
            compiler_params=pltpu.CompilerParams(
                dimension_semantics=("parallel", "parallel"),
                vmem_limit_bytes=int(vmem_limit_bytes),
            ),
        )

    args = (hidden_states, k_all, v_all, wq_eff, wo, bo)
    try:
        out = build(True)(*args)
        return jax.block_until_ready(out)
    except Exception:
        # Fallback for JAX builds without BlockSpec(pipeline_mode=pl.Buffered(1))
        # support: default double-buffered constant weights.
        return build(False)(*args)


def _reference(hidden_states, encoder_hidden_states, params, *, heads, scale,
               module_scale):
    """Pure-JAX reference mirroring the (unfused) PyTorch forward."""
    B, Sq, H = hidden_states.shape
    head_dim = H // heads
    lora_scale = scale * module_scale
    attn_scale = head_dim ** -0.5

    q = hidden_states @ params["wq"]
    k = (encoder_hidden_states @ params["k_down"]) @ params["k_up"]
    v = (encoder_hidden_states @ params["v_down"]) @ params["v_up"]
    q = q + lora_scale * ((q @ params["q_down"]) @ params["q_up"])
    k = k + lora_scale * ((k @ params["k_down"]) @ params["k_up"])
    v = v + lora_scale * ((v @ params["v_down"]) @ params["v_up"])

    def split_heads(x):  # (B, S, H) -> (B, heads, S, D)
        Bx, S, _ = x.shape
        return x.reshape(Bx, S, heads, head_dim).transpose(0, 2, 1, 3)

    qh, kh, vh = split_heads(q), split_heads(k), split_heads(v)
    scores = jnp.einsum("bhqd,bhkd->bhqk", qh, kh) * attn_scale
    probs = jax.nn.softmax(scores, axis=-1)
    out = jnp.einsum("bhqk,bhkd->bhqd", probs, vh)
    out = out.transpose(0, 2, 1, 3).reshape(B, Sq, H)
    return out @ params["wo"] + params["bo"]


if __name__ == "__main__":
    # Small shapes consistent with the module (hidden_size == cross_attention_dim).
    B = 2
    Sq = 8          # query sequence length
    Skv = 8         # encoder (key/value) sequence length
    hidden_size = 32
    cross_attention_dim = 32
    heads = 2
    rank = 4
    module_scale = 1.0   # self.scale
    fwd_scale = 1.0      # forward(scale=...)

    key = jax.random.PRNGKey(0)
    ks = jax.random.split(key, 12)

    def w(k, shape):
        return 0.05 * jax.random.normal(k, shape, dtype=jnp.float32)

    hidden_states = jax.random.normal(ks[0], (B, Sq, hidden_size), dtype=jnp.float32)
    encoder_hidden_states = jax.random.normal(
        ks[1], (B, Skv, cross_attention_dim), dtype=jnp.float32
    )

    params = {
        # attn.to_q / attn.to_out[0] weights, stored (in, out)
        "wq": w(ks[2], (hidden_size, hidden_size)),
        "wo": w(ks[3], (hidden_size, hidden_size)),
        "bo": w(ks[4], (1, hidden_size)),
        # LoRA weights, stored (in, out)
        "q_down": w(ks[5], (hidden_size, rank)),
        "q_up": w(ks[6], (rank, hidden_size)),
        "k_down": w(ks[7], (cross_attention_dim, rank)),
        "k_up": w(ks[8], (rank, hidden_size)),
        "v_down": w(ks[9], (cross_attention_dim, rank)),
        "v_up": w(ks[10], (rank, hidden_size)),
    }

    out = lora_ip_attn_processor(
        hidden_states,
        encoder_hidden_states,
        params,
        heads=heads,
        scale=fwd_scale,
        module_scale=module_scale,
    )
    out = jax.block_until_ready(out)

    ref = _reference(
        hidden_states,
        encoder_hidden_states,
        params,
        heads=heads,
        scale=fwd_scale,
        module_scale=module_scale,
    )
    assert out.shape == (B, Sq, hidden_size)
    # Tolerance allows for the approximate (EUP) softmax reciprocal and the
    # reassociated (fused-weight / hoisted-projection) math.
    assert jnp.allclose(out, ref, atol=2e-3, rtol=2e-3), \
        "Pallas kernel mismatch vs reference"

    print("KERNEL_OK")
</pallas_src>

<mosaic_0001>
module attributes {stable_mosaic.version = 11 : i64} {
  func.func @_attn_kernel(%arg0: i32, %arg1: i32, %arg2: memref<1x8x32xf32, #tpu.memory_space<vmem>>, %arg3: memref<1x128x32xf32, #tpu.memory_space<vmem>>, %arg4: memref<1x128x32xf32, #tpu.memory_space<vmem>>, %arg5: memref<32x32xf32, #tpu.memory_space<vmem>>, %arg6: memref<32x32xf32, #tpu.memory_space<vmem>>, %arg7: memref<1x32xf32, #tpu.memory_space<vmem>>, %arg8: memref<1x8x32xf32, #tpu.memory_space<vmem>>, %arg9: memref<8x32xf32, #tpu.memory_space<vmem>>) attributes {dimension_semantics = [#tpu.dimension_semantics<parallel>, #tpu.dimension_semantics<parallel>], iteration_bounds = array<i64: 2, 1>, scalar_prefetch = 0 : i64, scratch_operands = 1 : i64, tpu.core_type = #tpu.core_type<tc>, window_params = [{transform_indices = @transform_0, window_bounds = array<i64: 1, 8, 32>}, {transform_indices = @transform_1, window_bounds = array<i64: 1, 128, 32>}, {transform_indices = @transform_2, window_bounds = array<i64: 1, 128, 32>}, {pipeline_mode = #tpu.pipeline_mode<synchronous>, transform_indices = @transform_3, window_bounds = array<i64: 32, 32>}, {pipeline_mode = #tpu.pipeline_mode<synchronous>, transform_indices = @transform_4, window_bounds = array<i64: 32, 32>}, {pipeline_mode = #tpu.pipeline_mode<synchronous>, transform_indices = @transform_5, window_bounds = array<i64: 1, 32>}, {transform_indices = @transform_6, window_bounds = array<i64: 1, 8, 32>}]} {
    %c0 = arith.constant 0 : index
    %c0_0 = arith.constant 0 : index
    %c0_1 = arith.constant 0 : index
    %0 = vector.load %arg2[%c0, %c0_0, %c0_1] : memref<1x8x32xf32, #tpu.memory_space<vmem>>, vector<1x8x32xf32>
    %1 = vector.shape_cast %0 : vector<1x8x32xf32> to vector<8x32xf32>
    %c0_2 = arith.constant 0 : index
    %c0_3 = arith.constant 0 : index
    %c0_4 = arith.constant 0 : index
    %2 = vector.load %arg3[%c0_2, %c0_3, %c0_4] : memref<1x128x32xf32, #tpu.memory_space<vmem>>, vector<1x128x32xf32>
    %3 = vector.shape_cast %2 : vector<1x128x32xf32> to vector<128x32xf32>
    %c0_5 = arith.constant 0 : index
    %c0_6 = arith.constant 0 : index
    %c0_7 = arith.constant 0 : index
    %4 = vector.load %arg4[%c0_5, %c0_6, %c0_7] : memref<1x128x32xf32, #tpu.memory_space<vmem>>, vector<1x128x32xf32>
    %5 = vector.shape_cast %4 : vector<1x128x32xf32> to vector<128x32xf32>
    %c0_8 = arith.constant 0 : index
    %c0_9 = arith.constant 0 : index
    %6 = vector.load %arg5[%c0_8, %c0_9] : memref<32x32xf32, #tpu.memory_space<vmem>>, vector<32x32xf32>
    %cst = arith.constant dense<0.000000e+00> : vector<8x32xf32>
    %7 = tpu.matmul %1, %6, %cst {dimension_numbers = #tpu.dot_dimension_numbers<[1], [0], [0], [1], [0, 0, 1, 1], [], []>} : vector<8x32xf32>, vector<32x32xf32>, vector<8x32xf32> -> vector<8x32xf32>
    %8 = tpu.iota {dimensions = array<i32: 1>} : vector<1x128xi32>
    %c8_i32 = arith.constant 8 : i32
    %9 = vector.broadcast %c8_i32 : i32 to vector<1x128xi32>
    %10 = arith.cmpi slt, %8, %9 : vector<1x128xi32>
    %cst_10 = arith.constant 0.000000e+00 : f32
    %cst_11 = arith.constant -1.000000e+30 : f32
    %11 = vector.broadcast %cst_10 : f32 to vector<1x128xf32>
    %12 = vector.broadcast %cst_11 : f32 to vector<1x128xf32>
    %13 = arith.select %10, %11, %12 : vector<1x128xi1>, vector<1x128xf32>
    %14 = vector.extract_strided_slice %7 {offsets = [0, 0], sizes = [8, 16], strides = [1, 1]} : vector<8x32xf32> to vector<8x16xf32>
    %15 = vector.extract_strided_slice %3 {offsets = [0, 0], sizes = [128, 16], strides = [1, 1]} : vector<128x32xf32> to vector<128x16xf32>
    %cst_12 = arith.constant dense<0.000000e+00> : vector<8x128xf32>
    %16 = tpu.matmul %14, %15, %cst_12 {dimension_numbers = #tpu.dot_dimension_numbers<[1], [1], [0], [0], [0, 0, 1, 0], [], []>} : vector<8x16xf32>, vector<128x16xf32>, vector<8x128xf32> -> vector<8x128xf32>
    %17 = vector.broadcast %13 : vector<1x128xf32> to vector<8x128xf32>
    %18 = arith.addf %16, %17 : vector<8x128xf32>
    %cst_13 = arith.constant dense<0xFF800000> : vector<8xf32>
    %19 = vector.multi_reduction <maximumf>, %18, %cst_13 [1] : vector<8x128xf32> to vector<8xf32>
    %20 = vector.shape_cast %19 : vector<8xf32> to vector<8x1xf32>
    %21 = vector.broadcast %20 : vector<8x1xf32> to vector<8x128xf32>
    %22 = arith.subf %18, %21 : vector<8x128xf32>
    %23 = math.exp %22 : vector<8x128xf32>
    %cst_14 = arith.constant dense<0.000000e+00> : vector<8xf32>
    %24 = vector.multi_reduction <add>, %23, %cst_14 [1] : vector<8x128xf32> to vector<8xf32>
    %25 = vector.shape_cast %24 : vector<8xf32> to vector<8x1xf32>
    %26 = vector.extract_strided_slice %5 {offsets = [0, 0], sizes = [128, 16], strides = [1, 1]} : vector<128x32xf32> to vector<128x16xf32>
    %cst_15 = arith.constant dense<0.000000e+00> : vector<8x16xf32>
    %27 = tpu.matmul %23, %26, %cst_15 {dimension_numbers = #tpu.dot_dimension_numbers<[1], [0], [0], [1], [0, 0, 1, 1], [], []>} : vector<8x128xf32>, vector<128x16xf32>, vector<8x16xf32> -> vector<8x16xf32>
    %28 = tpu.reciprocal %25 {approx = true} : vector<8x1xf32> -> vector<8x1xf32>
    %29 = vector.broadcast %28 : vector<8x1xf32> to vector<8x16xf32>
    %30 = arith.mulf %27, %29 : vector<8x16xf32>
    %c0_16 = arith.constant 0 : index
    %c0_17 = arith.constant 0 : index
    %31 = vector.load %arg9[%c0_16, %c0_17] : memref<8x32xf32, #tpu.memory_space<vmem>>, vector<8x16xf32>
    tpu.vector_store %arg9[%c0_16, %c0_17], %30 {strides = array<i32>} : memref<8x32xf32, #tpu.memory_space<vmem>>, vector<8x16xf32>,
    %32 = vector.extract_strided_slice %7 {offsets = [0, 16], sizes = [8, 16], strides = [1, 1]} : vector<8x32xf32> to vector<8x16xf32>
    %33 = vector.extract_strided_slice %3 {offsets = [0, 16], sizes = [128, 16], strides = [1, 1]} : vector<128x32xf32> to vector<128x16xf32>
    %cst_18 = arith.constant dense<0.000000e+00> : vector<8x128xf32>
    %34 = tpu.matmul %32, %33, %cst_18 {dimension_numbers = #tpu.dot_dimension_numbers<[1], [1], [0], [0], [0, 0, 1, 0], [], []>} : vector<8x16xf32>, vector<128x16xf32>, vector<8x128xf32> -> vector<8x128xf32>
    %35 = vector.broadcast %13 : vector<1x128xf32> to vector<8x128xf32>
    %36 = arith.addf %34, %35 : vector<8x128xf32>
    %cst_19 = arith.constant dense<0xFF800000> : vector<8xf32>
    %37 = vector.multi_reduction <maximumf>, %36, %cst_19 [1] : vector<8x128xf32> to vector<8xf32>
    %38 = vector.shape_cast %37 : vector<8xf32> to vector<8x1xf32>
    %39 = vector.broadcast %38 : vector<8x1xf32> to vector<8x128xf32>
    %40 = arith.subf %36, %39 : vector<8x128xf32>
    %41 = math.exp %40 : vector<8x128xf32>
    %cst_20 = arith.constant dense<0.000000e+00> : vector<8xf32>
    %42 = vector.multi_reduction <add>, %41, %cst_20 [1] : vector<8x128xf32> to vector<8xf32>
    %43 = vector.shape_cast %42 : vector<8xf32> to vector<8x1xf32>
    %44 = vector.extract_strided_slice %5 {offsets = [0, 16], sizes = [128, 16], strides = [1, 1]} : vector<128x32xf32> to vector<128x16xf32>
    %cst_21 = arith.constant dense<0.000000e+00> : vector<8x16xf32>
    %45 = tpu.matmul %41, %44, %cst_21 {dimension_numbers = #tpu.dot_dimension_numbers<[1], [0], [0], [1], [0, 0, 1, 1], [], []>} : vector<8x128xf32>, vector<128x16xf32>, vector<8x16xf32> -> vector<8x16xf32>
    %46 = tpu.reciprocal %43 {approx = true} : vector<8x1xf32> -> vector<8x1xf32>
    %47 = vector.broadcast %46 : vector<8x1xf32> to vector<8x16xf32>
    %48 = arith.mulf %45, %47 : vector<8x16xf32>
    %c0_22 = arith.constant 0 : index
    %c16 = arith.constant 16 : index
    %49 = vector.load %arg9[%c0_22, %c16] : memref<8x32xf32, #tpu.memory_space<vmem>>, vector<8x16xf32>
    tpu.vector_store %arg9[%c0_22, %c16], %48 {strides = array<i32>} : memref<8x32xf32, #tpu.memory_space<vmem>>, vector<8x16xf32>,
    %c0_23 = arith.constant 0 : index
    %c0_24 = arith.constant 0 : index
    %50 = vector.load %arg9[%c0_23, %c0_24] : memref<8x32xf32, #tpu.memory_space<vmem>>, vector<8x32xf32>
    %c0_25 = arith.constant 0 : index
    %c0_26 = arith.constant 0 : index
    %51 = vector.load %arg6[%c0_25, %c0_26] : memref<32x32xf32, #tpu.memory_space<vmem>>, vector<32x32xf32>
    %cst_27 = arith.constant dense<0.000000e+00> : vector<8x32xf32>
    %52 = tpu.matmul %50, %51, %cst_27 {dimension_numbers = #tpu.dot_dimension_numbers<[1], [0], [0], [1], [0, 0, 1, 1], [], []>} : vector<8x32xf32>, vector<32x32xf32>, vector<8x32xf32> -> vector<8x32xf32>
    %c0_28 = arith.constant 0 : index
    %c0_29 = arith.constant 0 : index
    %53 = vector.load %arg7[%c0_28, %c0_29] : memref<1x32xf32, #tpu.memory_space<vmem>>, vector<1x32xf32>
    %54 = vector.broadcast %53 : vector<1x32xf32> to vector<8x32xf32>
    %55 = arith.addf %52, %54 : vector<8x32xf32>
    %c0_30 = arith.constant 0 : index
    %c0_31 = arith.constant 0 : index
    %c0_32 = arith.constant 0 : index
    %56 = vector.load %arg8[%c0_30, %c0_31, %c0_32] : memref<1x8x32xf32, #tpu.memory_space<vmem>>, vector<1x8x32xf32>
    %57 = vector.shape_cast %56 : vector<1x8x32xf32> to vector<8x32xf32>
    %58 = vector.shape_cast %55 : vector<8x32xf32> to vector<1x8x32xf32>
    tpu.vector_store %arg8[%c0_30, %c0_31, %c0_32], %58 {strides = array<i32>} : memref<1x8x32xf32, #tpu.memory_space<vmem>>, vector<1x8x32xf32>,
    return
  }
  func.func @transform_0(%arg0: i32, %arg1: i32) -> (i32, i32, i32) {
    %c0_i32 = arith.constant 0 : i32
    %c0_i32_0 = arith.constant 0 : i32
    return %arg0, %arg1, %c0_i32 : i32, i32, i32
  }
  func.func @transform_1(%arg0: i32, %arg1: i32) -> (i32, i32, i32) {
    %c0_i32 = arith.constant 0 : i32
    %c0_i32_0 = arith.constant 0 : i32
    %c0_i32_1 = arith.constant 0 : i32
    return %arg0, %c0_i32, %c0_i32_0 : i32, i32, i32
  }
  func.func @transform_2(%arg0: i32, %arg1: i32) -> (i32, i32, i32) {
    %c0_i32 = arith.constant 0 : i32
    %c0_i32_0 = arith.constant 0 : i32
    %c0_i32_1 = arith.constant 0 : i32
    return %arg0, %c0_i32, %c0_i32_0 : i32, i32, i32
  }
  func.func @transform_3(%arg0: i32, %arg1: i32) -> (i32, i32) {
    %c0_i32 = arith.constant 0 : i32
    %c0_i32_0 = arith.constant 0 : i32
    %c0_i32_1 = arith.constant 0 : i32
    return %c0_i32, %c0_i32_0 : i32, i32
  }
  func.func @transform_4(%arg0: i32, %arg1: i32) -> (i32, i32) {
    %c0_i32 = arith.constant 0 : i32
    %c0_i32_0 = arith.constant 0 : i32
    %c0_i32_1 = arith.constant 0 : i32
    return %c0_i32, %c0_i32_0 : i32, i32
  }
  func.func @transform_5(%arg0: i32, %arg1: i32) -> (i32, i32) {
    %c0_i32 = arith.constant 0 : i32
    %c0_i32_0 = arith.constant 0 : i32
    %c0_i32_1 = arith.constant 0 : i32
    return %c0_i32, %c0_i32_0 : i32, i32
  }
  func.func @transform_6(%arg0: i32, %arg1: i32) -> (i32, i32, i32) {
    %c0_i32 = arith.constant 0 : i32
    %c0_i32_0 = arith.constant 0 : i32
    return %arg0, %arg1, %c0_i32 : i32, i32, i32
  }
}

module attributes {stable_mosaic.version = 11 : i64} {
  func.func @_attn_kernel(%arg0: i32, %arg1: i32, %arg2: memref<1x8x32xf32, #tpu.memory_space<vmem>>, %arg3: memref<1x128x32xf32, #tpu.memory_space<vmem>>, %arg4: memref<1x128x32xf32, #tpu.memory_space<vmem>>, %arg5: memref<32x32xf32, #tpu.memory_space<vmem>>, %arg6: memref<32x32xf32, #tpu.memory_space<vmem>>, %arg7: memref<1x32xf32, #tpu.memory_space<vmem>>, %arg8: memref<1x8x32xf32, #tpu.memory_space<vmem>>, %arg9: memref<8x32xf32, #tpu.memory_space<vmem>>) attributes {dimension_semantics = [#tpu.dimension_semantics<parallel>, #tpu.dimension_semantics<parallel>], iteration_bounds = array<i64: 2, 1>, scalar_prefetch = 0 : i64, scratch_operands = 1 : i64, tpu.core_type = #tpu.core_type<tc>, window_params = [{transform_indices = @transform_0, window_bounds = array<i64: 1, 8, 32>}, {transform_indices = @transform_1, window_bounds = array<i64: 1, 128, 32>}, {transform_indices = @transform_2, window_bounds = array<i64: 1, 128, 32>}, {pipeline_mode = #tpu.pipeline_mode<synchronous>, transform_indices = @transform_3, window_bounds = array<i64: 32, 32>}, {pipeline_mode = #tpu.pipeline_mode<synchronous>, transform_indices = @transform_4, window_bounds = array<i64: 32, 32>}, {pipeline_mode = #tpu.pipeline_mode<synchronous>, transform_indices = @transform_5, window_bounds = array<i64: 1, 32>}, {transform_indices = @transform_6, window_bounds = array<i64: 1, 8, 32>}]} {
    %c0 = arith.constant 0 : index
    %c0_0 = arith.constant 0 : index
    %c0_1 = arith.constant 0 : index
    %0 = vector.load %arg2[%c0, %c0_0, %c0_1] : memref<1x8x32xf32, #tpu.memory_space<vmem>>, vector<1x8x32xf32>
    %1 = vector.shape_cast %0 : vector<1x8x32xf32> to vector<8x32xf32>
    %c0_2 = arith.constant 0 : index
    %c0_3 = arith.constant 0 : index
    %c0_4 = arith.constant 0 : index
    %2 = vector.load %arg3[%c0_2, %c0_3, %c0_4] : memref<1x128x32xf32, #tpu.memory_space<vmem>>, vector<1x128x32xf32>
    %3 = vector.shape_cast %2 : vector<1x128x32xf32> to vector<128x32xf32>
    %c0_5 = arith.constant 0 : index
    %c0_6 = arith.constant 0 : index
    %c0_7 = arith.constant 0 : index
    %4 = vector.load %arg4[%c0_5, %c0_6, %c0_7] : memref<1x128x32xf32, #tpu.memory_space<vmem>>, vector<1x128x32xf32>
    %5 = vector.shape_cast %4 : vector<1x128x32xf32> to vector<128x32xf32>
    %c0_8 = arith.constant 0 : index
    %c0_9 = arith.constant 0 : index
    %6 = vector.load %arg5[%c0_8, %c0_9] : memref<32x32xf32, #tpu.memory_space<vmem>>, vector<32x32xf32>
    %cst = arith.constant dense<0.000000e+00> : vector<8x32xf32>
    %7 = tpu.matmul %1, %6, %cst {dimension_numbers = #tpu.dot_dimension_numbers<[1], [0], [0], [1], [0, 0, 1, 1], [], []>} : vector<8x32xf32>, vector<32x32xf32>, vector<8x32xf32> -> vector<8x32xf32>
    %8 = tpu.iota {dimensions = array<i32: 1>} : vector<1x128xi32>
    %c8_i32 = arith.constant 8 : i32
    %9 = vector.broadcast %c8_i32 : i32 to vector<1x128xi32>
    %10 = arith.cmpi slt, %8, %9 : vector<1x128xi32>
    %cst_10 = arith.constant 0.000000e+00 : f32
    %cst_11 = arith.constant -1.000000e+30 : f32
    %11 = vector.broadcast %cst_10 : f32 to vector<1x128xf32>
    %12 = vector.broadcast %cst_11 : f32 to vector<1x128xf32>
    %13 = arith.select %10, %11, %12 : vector<1x128xi1>, vector<1x128xf32>
    %14 = vector.extract_strided_slice %7 {offsets = [0, 0], sizes = [8, 16], strides = [1, 1]} : vector<8x32xf32> to vector<8x16xf32>
    %15 = vector.extract_strided_slice %3 {offsets = [0, 0], sizes = [128, 16], strides = [1, 1]} : vector<128x32xf32> to vector<128x16xf32>
    %cst_12 = arith.constant dense<0.000000e+00> : vector<8x128xf32>
    %16 = tpu.matmul %14, %15, %cst_12 {dimension_numbers = #tpu.dot_dimension_numbers<[1], [1], [0], [0], [0, 0, 1, 0], [], []>} : vector<8x16xf32>, vector<128x16xf32>, vector<8x128xf32> -> vector<8x128xf32>
    %17 = vector.broadcast %13 : vector<1x128xf32> to vector<8x128xf32>
    %18 = arith.addf %16, %17 : vector<8x128xf32>
    %cst_13 = arith.constant dense<0xFF800000> : vector<8xf32>
    %19 = vector.multi_reduction <maximumf>, %18, %cst_13 [1] : vector<8x128xf32> to vector<8xf32>
    %20 = vector.shape_cast %19 : vector<8xf32> to vector<8x1xf32>
    %21 = vector.broadcast %20 : vector<8x1xf32> to vector<8x128xf32>
    %22 = arith.subf %18, %21 : vector<8x128xf32>
    %23 = math.exp %22 : vector<8x128xf32>
    %cst_14 = arith.constant dense<0.000000e+00> : vector<8xf32>
    %24 = vector.multi_reduction <add>, %23, %cst_14 [1] : vector<8x128xf32> to vector<8xf32>
    %25 = vector.shape_cast %24 : vector<8xf32> to vector<8x1xf32>
    %26 = vector.extract_strided_slice %5 {offsets = [0, 0], sizes = [128, 16], strides = [1, 1]} : vector<128x32xf32> to vector<128x16xf32>
    %cst_15 = arith.constant dense<0.000000e+00> : vector<8x16xf32>
    %27 = tpu.matmul %23, %26, %cst_15 {dimension_numbers = #tpu.dot_dimension_numbers<[1], [0], [0], [1], [0, 0, 1, 1], [], []>} : vector<8x128xf32>, vector<128x16xf32>, vector<8x16xf32> -> vector<8x16xf32>
    %28 = tpu.reciprocal %25 {approx = true} : vector<8x1xf32> -> vector<8x1xf32>
    %29 = vector.broadcast %28 : vector<8x1xf32> to vector<8x16xf32>
    %30 = arith.mulf %27, %29 : vector<8x16xf32>
    %c0_16 = arith.constant 0 : index
    %c0_17 = arith.constant 0 : index
    %31 = vector.load %arg9[%c0_16, %c0_17] : memref<8x32xf32, #tpu.memory_space<vmem>>, vector<8x16xf32>
    tpu.vector_store %arg9[%c0_16, %c0_17], %30 {strides = array<i32>} : memref<8x32xf32, #tpu.memory_space<vmem>>, vector<8x16xf32>,
    %32 = vector.extract_strided_slice %7 {offsets = [0, 16], sizes = [8, 16], strides = [1, 1]} : vector<8x32xf32> to vector<8x16xf32>
    %33 = vector.extract_strided_slice %3 {offsets = [0, 16], sizes = [128, 16], strides = [1, 1]} : vector<128x32xf32> to vector<128x16xf32>
    %cst_18 = arith.constant dense<0.000000e+00> : vector<8x128xf32>
    %34 = tpu.matmul %32, %33, %cst_18 {dimension_numbers = #tpu.dot_dimension_numbers<[1], [1], [0], [0], [0, 0, 1, 0], [], []>} : vector<8x16xf32>, vector<128x16xf32>, vector<8x128xf32> -> vector<8x128xf32>
    %35 = vector.broadcast %13 : vector<1x128xf32> to vector<8x128xf32>
    %36 = arith.addf %34, %35 : vector<8x128xf32>
    %cst_19 = arith.constant dense<0xFF800000> : vector<8xf32>
    %37 = vector.multi_reduction <maximumf>, %36, %cst_19 [1] : vector<8x128xf32> to vector<8xf32>
    %38 = vector.shape_cast %37 : vector<8xf32> to vector<8x1xf32>
    %39 = vector.broadcast %38 : vector<8x1xf32> to vector<8x128xf32>
    %40 = arith.subf %36, %39 : vector<8x128xf32>
    %41 = math.exp %40 : vector<8x128xf32>
    %cst_20 = arith.constant dense<0.000000e+00> : vector<8xf32>
    %42 = vector.multi_reduction <add>, %41, %cst_20 [1] : vector<8x128xf32> to vector<8xf32>
    %43 = vector.shape_cast %42 : vector<8xf32> to vector<8x1xf32>
    %44 = vector.extract_strided_slice %5 {offsets = [0, 16], sizes = [128, 16], strides = [1, 1]} : vector<128x32xf32> to vector<128x16xf32>
    %cst_21 = arith.constant dense<0.000000e+00> : vector<8x16xf32>
    %45 = tpu.matmul %41, %44, %cst_21 {dimension_numbers = #tpu.dot_dimension_numbers<[1], [0], [0], [1], [0, 0, 1, 1], [], []>} : vector<8x128xf32>, vector<128x16xf32>, vector<8x16xf32> -> vector<8x16xf32>
    %46 = tpu.reciprocal %43 {approx = true} : vector<8x1xf32> -> vector<8x1xf32>
    %47 = vector.broadcast %46 : vector<8x1xf32> to vector<8x16xf32>
    %48 = arith.mulf %45, %47 : vector<8x16xf32>
    %c0_22 = arith.constant 0 : index
    %c16 = arith.constant 16 : index
    %49 = vector.load %arg9[%c0_22, %c16] : memref<8x32xf32, #tpu.memory_space<vmem>>, vector<8x16xf32>
    tpu.vector_store %arg9[%c0_22, %c16], %48 {strides = array<i32>} : memref<8x32xf32, #tpu.memory_space<vmem>>, vector<8x16xf32>,
    %c0_23 = arith.constant 0 : index
    %c0_24 = arith.constant 0 : index
    %50 = vector.load %arg9[%c0_23, %c0_24] : memref<8x32xf32, #tpu.memory_space<vmem>>, vector<8x32xf32>
    %c0_25 = arith.constant 0 : index
    %c0_26 = arith.constant 0 : index
    %51 = vector.load %arg6[%c0_25, %c0_26] : memref<32x32xf32, #tpu.memory_space<vmem>>, vector<32x32xf32>
    %cst_27 = arith.constant dense<0.000000e+00> : vector<8x32xf32>
    %52 = tpu.matmul %50, %51, %cst_27 {dimension_numbers = #tpu.dot_dimension_numbers<[1], [0], [0], [1], [0, 0, 1, 1], [], []>} : vector<8x32xf32>, vector<32x32xf32>, vector<8x32xf32> -> vector<8x32xf32>
    %c0_28 = arith.constant 0 : index
    %c0_29 = arith.constant 0 : index
    %53 = vector.load %arg7[%c0_28, %c0_29] : memref<1x32xf32, #tpu.memory_space<vmem>>, vector<1x32xf32>
    %54 = vector.broadcast %53 : vector<1x32xf32> to vector<8x32xf32>
    %55 = arith.addf %52, %54 : vector<8x32xf32>
    %c0_30 = arith.constant 0 : index
    %c0_31 = arith.constant 0 : index
    %c0_32 = arith.constant 0 : index
    %56 = vector.load %arg8[%c0_30, %c0_31, %c0_32] : memref<1x8x32xf32, #tpu.memory_space<vmem>>, vector<1x8x32xf32>
    %57 = vector.shape_cast %56 : vector<1x8x32xf32> to vector<8x32xf32>
    %58 = vector.shape_cast %55 : vector<8x32xf32> to vector<1x8x32xf32>
    tpu.vector_store %arg8[%c0_30, %c0_31, %c0_32], %58 {strides = array<i32>} : memref<1x8x32xf32, #tpu.memory_space<vmem>>, vector<1x8x32xf32>,
    return
  }
  func.func @transform_0(%arg0: i32, %arg1: i32) -> (i32, i32, i32) {
    %c0_i32 = arith.constant 0 : i32
    %c0_i32_0 = arith.constant 0 : i32
    return %arg0, %arg1, %c0_i32 : i32, i32, i32
  }
  func.func @transform_1(%arg0: i32, %arg1: i32) -> (i32, i32, i32) {
    %c0_i32 = arith.constant 0 : i32
    %c0_i32_0 = arith.constant 0 : i32
    %c0_i32_1 = arith.constant 0 : i32
    return %arg0, %c0_i32, %c0_i32_0 : i32, i32, i32
  }
  func.func @transform_2(%arg0: i32, %arg1: i32) -> (i32, i32, i32) {
    %c0_i32 = arith.constant 0 : i32
    %c0_i32_0 = arith.constant 0 : i32
    %c0_i32_1 = arith.constant 0 : i32
    return %arg0, %c0_i32, %c0_i32_0 : i32, i32, i32
  }
  func.func @transform_3(%arg0: i32, %arg1: i32) -> (i32, i32) {
    %c0_i32 = arith.constant 0 : i32
    %c0_i32_0 = arith.constant 0 : i32
    %c0_i32_1 = arith.constant 0 : i32
    return %c0_i32, %c0_i32_0 : i32, i32
  }
  func.func @transform_4(%arg0: i32, %arg1: i32) -> (i32, i32) {
    %c0_i32 = arith.constant 0 : i32
    %c0_i32_0 = arith.constant 0 : i32
    %c0_i32_1 = arith.constant 0 : i32
    return %c0_i32, %c0_i32_0 : i32, i32
  }
  func.func @transform_5(%arg0: i32, %arg1: i32) -> (i32, i32) {
    %c0_i32 = arith.constant 0 : i32
    %c0_i32_0 = arith.constant 0 : i32
    %c0_i32_1 = arith.constant 0 : i32
    return %c0_i32, %c0_i32_0 : i32, i32
  }
  func.func @transform_6(%arg0: i32, %arg1: i32) -> (i32, i32, i32) {
    %c0_i32 = arith.constant 0 : i32
    %c0_i32_0 = arith.constant 0 : i32
    return %arg0, %arg1, %c0_i32 : i32, i32, i32
  }
}

</mosaic_0001>

<llo_original>
// kernel: tpu_custom_call.1
$region0: #{tpu_custom_call.1}
  #allocation0 [shape = 'u32[]', space=smem, size = 0x4, offset = 0x4, fixed_abs, tag = 'smem constant byte address 0x4 - core index']
  #allocation1 [shape = 'u32[72,128]{1,0:T(1,128)}', space=vmem, size = 0x9000, scoped, tag = 'internal scratch']
  #allocation2 [shape = 'f32[8,32]{1,0:T(8,128)}', space=vmem, size = 0x1000, scoped, tag = 'scratch operand']
  %s0 = inlined_call_operand.vmem [shape: f32[2,8,32], index: 0, kind: input, shape index: {}]
  %s1 = inlined_call_operand.vmem [shape: f32[2,128,32], index: 1, kind: input, shape index: {}]
  %s2 = inlined_call_operand.vmem [shape: f32[2,128,32], index: 2, kind: input, shape index: {}]
  %s3 = inlined_call_operand.vmem [shape: f32[32,32], index: 3, kind: input, shape index: {}]
  %s4 = inlined_call_operand.vmem [shape: f32[32,32], index: 4, kind: input, shape index: {}]
  %s5 = inlined_call_operand.vmem [shape: f32[1,32], index: 5, kind: input, shape index: {}]
  %s6 = inlined_call_operand.hbm [shape: f32[2,8,32], index: 6, kind: output, shape index: {}]
  %s7 = sld [smem:[#allocation0]]
  $region57: #{tpu_custom_call.1} parent=0
    _
  %s9 = ssub.s32 1, %s7
  %s10 = scalar_select 0, %s9, %s7
  $region1: #{tpu_custom_call.1} parent=0
    #allocation3 [shape = 'u8[8192]{0}', space=vmem, size = 0x2000, scoped, tag = 'output window, operand 0']
    #allocation4 [shape = 's32[2]{0}', space=sflag, size = 0x8, scoped, tag = 'scoped memory for tpu_custom_call.1']
    %11 = vsyncpa [#allocation4], 0
    %s12 = scalar_lea.sflag [#allocation4], 1
    %13 = vsyncpa %s12, 0
    loop: start=0, step=1, limit=4
    $region2: #{tpu_custom_call.1} parent=1 // loop_pre_header
      _
    $region3: #{tpu_custom_call.1} parent=1 // loop_header
      %s15 = sphi 0, %s19
      %p16 = scmp.ge.s32.totalorder %s15, 4
      %s22 = sphi 0, %s34
      %s23 = sphi 0, %s30
      %s24 = sphi 0, %s22
      %s25 = sphi 0, %s23
      %s26 = sphi 0, %s24
      %s27 = sphi 0, %s25
      %s39 = sphi 0, %s41
      %s42 = sphi 0, %s39
      %s43 = sphi 0, %s42
      %s59 = sphi 0, %s43
      %s65 = sphi 0, %s67
      %s68 = sphi 0, %s65
      %s69 = sphi 0, %s68
      %s85 = sphi 0, %s69
      %s91 = sphi 0, %s93
      %s94 = sphi 0, %s91
      %s95 = sphi 0, %s94
      %s111 = sphi 0, %s95
      %s115 = sphi 0, %s115
      %s117 = sphi 0, %s115
      %s118 = sphi 0, %s117
      %s132 = sphi 0, %s118
      %s136 = sphi 0, %s136
      %s138 = sphi 0, %s136
      %s139 = sphi 0, %s138
      %s153 = sphi 0, %s139
      %s157 = sphi 0, %s157
      %s159 = sphi 0, %s157
      %s160 = sphi 0, %s159
      %s174 = sphi 0, %s160
      %s182 = sphi 0, %s184
      %s185 = sphi 0, %s182
      %s186 = sphi 0, %s185
      %s202 = sphi 0, %s186
    $region4: #{tpu_custom_call.1} parent=1 // loop_header_branch
      %18 = sbr.rel (%p16) target = $region8
    $region5: #{tpu_custom_call.1} parent=1 // loop_body
      %s20 = ssub.s32 %s15, 1
      %s21 = ssub.s32 %s15, 2
      %s28 = sadd.s32 1, %s23
      %p29 = scmp.ge.s32.totalorder %s28, 1
      %s30 = scalar_select %p29, 0, %s28
      %s31 = sadd.s32 1, %s22
      %s32 = scalar_select %p29, %s31, %s22
      %p33 = scmp.ge.s32.totalorder %s32, 2
      %s34 = scalar_select %p33, 0, %s32
      %s35 = ssub.s32 %s22, %s34
      %s36 = ssub.s32 %s23, %s30
      %s37 = sor.u32 %s35, %s36
      %p38 = scmp.eq.s32.totalorder %s37, 0
      %s40 = sadd.s32 %s39, 1
      %s41 = scalar_select %p38, %s39, %s40
      %p44 = pneg %p38
      %p45 = scmp.eq.s32.totalorder %s15, 1
      %p46 = por %p44, %p45
      %p47 = scmp.ne.s32.totalorder %s39, %s42
      %p48 = scmp.eq.s32.totalorder %s15, 0
      %p49 = por %p47, %p48
      %p50 = scmp.ne.s32.totalorder %s39, %s42
      %p51 = scmp.eq.s32.totalorder %s20, 1
      %p52 = por %p50, %p51
      %p53 = scmp.ne.s32.totalorder %s42, %s43
      %p54 = scmp.eq.s32.totalorder %s20, 0
      %p55 = por %p53, %p54
      %p56 = scmp.ne.s32.totalorder %s42, %s43
      %p57 = scmp.eq.s32.totalorder %s21, 1
      %p58 = por %p56, %p57
      %p60 = scmp.ne.s32.totalorder %s43, %s59
      %p61 = scmp.eq.s32.totalorder %s21, 0
      %p62 = por %p60, %p61
      %s63 = ssub.s32 %s22, %s34
      %p64 = scmp.eq.s32.totalorder %s63, 0
      %s66 = sadd.s32 %s65, 1
      %s67 = scalar_select %p64, %s65, %s66
      %p70 = pneg %p64
      %p71 = scmp.eq.s32.totalorder %s15, 1
      %p72 = por %p70, %p71
      %p73 = scmp.ne.s32.totalorder %s65, %s68
      %p74 = scmp.eq.s32.totalorder %s15, 0
      %p75 = por %p73, %p74
      %p76 = scmp.ne.s32.totalorder %s65, %s68
      %p77 = scmp.eq.s32.totalorder %s20, 1
      %p78 = por %p76, %p77
      %p79 = scmp.ne.s32.totalorder %s68, %s69
      %p80 = scmp.eq.s32.totalorder %s20, 0
      %p81 = por %p79, %p80
      %p82 = scmp.ne.s32.totalorder %s68, %s69
      %p83 = scmp.eq.s32.totalorder %s21, 1
      %p84 = por %p82, %p83
      %p86 = scmp.ne.s32.totalorder %s69, %s85
      %p87 = scmp.eq.s32.totalorder %s21, 0
      %p88 = por %p86, %p87
      %s89 = ssub.s32 %s22, %s34
      %p90 = scmp.eq.s32.totalorder %s89, 0
      %s92 = sadd.s32 %s91, 1
      %s93 = scalar_select %p90, %s91, %s92
      %p96 = pneg %p90
      %p97 = scmp.eq.s32.totalorder %s15, 1
      %p98 = por %p96, %p97
      %p99 = scmp.ne.s32.totalorder %s91, %s94
      %p100 = scmp.eq.s32.totalorder %s15, 0
      %p101 = por %p99, %p100
      %p102 = scmp.ne.s32.totalorder %s91, %s94
      %p103 = scmp.eq.s32.totalorder %s20, 1
      %p104 = por %p102, %p103
      %p105 = scmp.ne.s32.totalorder %s94, %s95
      %p106 = scmp.eq.s32.totalorder %s20, 0
      %p107 = por %p105, %p106
      %p108 = scmp.ne.s32.totalorder %s94, %s95
      %p109 = scmp.eq.s32.totalorder %s21, 1
      %p110 = por %p108, %p109
      %p112 = scmp.ne.s32.totalorder %s95, %s111
      %p113 = scmp.eq.s32.totalorder %s21, 0
      %p114 = por %p112, %p113
      %s116 = sadd.s32 %s115, 1
      %p119 = scmp.eq.s32.totalorder %s15, 1
      %p120 = scmp.ne.s32.totalorder %s115, %s117
      %p121 = scmp.eq.s32.totalorder %s15, 0
      %p122 = por %p120, %p121
      %p123 = scmp.ne.s32.totalorder %s115, %s117
      %p124 = scmp.eq.s32.totalorder %s20, 1
      %p125 = por %p123, %p124
      %p126 = scmp.ne.s32.totalorder %s117, %s118
      %p127 = scmp.eq.s32.totalorder %s20, 0
      %p128 = por %p126, %p127
      %p129 = scmp.ne.s32.totalorder %s117, %s118
      %p130 = scmp.eq.s32.totalorder %s21, 1
      %p131 = por %p129, %p130
      %p133 = scmp.ne.s32.totalorder %s118, %s132
      %p134 = scmp.eq.s32.totalorder %s21, 0
      %p135 = por %p133, %p134
      %s137 = sadd.s32 %s136, 1
      %p140 = scmp.eq.s32.totalorder %s15, 1
      %p141 = scmp.ne.s32.totalorder %s136, %s138
      %p142 = scmp.eq.s32.totalorder %s15, 0
      %p143 = por %p141, %p142
      %p144 = scmp.ne.s32.totalorder %s136, %s138
      %p145 = scmp.eq.s32.totalorder %s20, 1
      %p146 = por %p144, %p145
      %p147 = scmp.ne.s32.totalorder %s138, %s139
      %p148 = scmp.eq.s32.totalorder %s20, 0
      %p149 = por %p147, %p148
      %p150 = scmp.ne.s32.totalorder %s138, %s139
      %p151 = scmp.eq.s32.totalorder %s21, 1
      %p152 = por %p150, %p151
      %p154 = scmp.ne.s32.totalorder %s139, %s153
      %p155 = scmp.eq.s32.totalorder %s21, 0
      %p156 = por %p154, %p155
      %s158 = sadd.s32 %s157, 1
      %p161 = scmp.eq.s32.totalorder %s15, 1
      %p162 = scmp.ne.s32.totalorder %s157, %s159
      %p163 = scmp.eq.s32.totalorder %s15, 0
      %p164 = por %p162, %p163
      %p165 = scmp.ne.s32.totalorder %s157, %s159
      %p166 = scmp.eq.s32.totalorder %s20, 1
      %p167 = por %p165, %p166
      %p168 = scmp.ne.s32.totalorder %s159, %s160
      %p169 = scmp.eq.s32.totalorder %s20, 0
      %p170 = por %p168, %p169
      %p171 = scmp.ne.s32.totalorder %s159, %s160
      %p172 = scmp.eq.s32.totalorder %s21, 1
      %p173 = por %p171, %p172
      %p175 = scmp.ne.s32.totalorder %s160, %s174
      %p176 = scmp.eq.s32.totalorder %s21, 0
      %p177 = por %p175, %p176
      %s178 = ssub.s32 %s22, %s34
      %s179 = ssub.s32 %s23, %s30
      %s180 = sor.u32 %s178, %s179
      %p181 = scmp.eq.s32.totalorder %s180, 0
      %s183 = sadd.s32 %s182, 1
      %s184 = scalar_select %p181, %s182, %s183
      %p187 = pneg %p181
      %p188 = scmp.eq.s32.totalorder %s15, 1
      %p189 = por %p187, %p188
      %p190 = scmp.ne.s32.totalorder %s182, %s185
      %p191 = scmp.eq.s32.totalorder %s15, 0
      %p192 = por %p190, %p191
      %p193 = scmp.ne.s32.totalorder %s182, %s185
      %p194 = scmp.eq.s32.totalorder %s20, 1
      %p195 = por %p193, %p194
      %p196 = scmp.ne.s32.totalorder %s185, %s186
      %p197 = scmp.eq.s32.totalorder %s20, 0
      %p198 = por %p196, %p197
      %p199 = scmp.ne.s32.totalorder %s185, %s186
      %p200 = scmp.eq.s32.totalorder %s21, 1
      %p201 = por %p199, %p200
      %p203 = scmp.ne.s32.totalorder %s186, %s202
      %p204 = scmp.eq.s32.totalorder %s21, 0
      %p205 = por %p203, %p204
      %p206 = scmp.le.s32.totalorder 1, %s15
      %p207 = scmp.lt.s32.totalorder %s15, 3
      %p208 = pnand %p206, %p207
      %p209 = pneg %p208
      // Predicated region
      $region9: #{tpu_custom_call.1} parent=5 // pred_check
        _
      $region10: #{tpu_custom_call.1} parent=5 // pred_check_branch
        %211 = sbr.rel (%p208) target = $region12
      $region11: #{tpu_custom_call.1} parent=5 // pred_region
        %s212 = ssub.s32 %s15, 1
        // Predicated region
        $region13: #{tpu_custom_call.1} parent=11 // pred_check
          %p213 = pneg %p128
        $region14: #{tpu_custom_call.1} parent=11 // pred_check_branch
          %215 = sbr.rel (%p213) target = $region16
        $region15: #{tpu_custom_call.1} parent=11 // pred_region
          _
        $region16: #{tpu_custom_call.1} parent=11 // pred_fallthru
          _
        // Predicated region
        $region17: #{tpu_custom_call.1} parent=11 // pred_check
          %p216 = pneg %p149
        $region18: #{tpu_custom_call.1} parent=11 // pred_check_branch
          %218 = sbr.rel (%p216) target = $region20
        $region19: #{tpu_custom_call.1} parent=11 // pred_region
          _
        $region20: #{tpu_custom_call.1} parent=11 // pred_fallthru
          _
        // Predicated region
        $region21: #{tpu_custom_call.1} parent=11 // pred_check
          %p219 = pneg %p170
        $region22: #{tpu_custom_call.1} parent=11 // pred_check_branch
          %221 = sbr.rel (%p219) target = $region24
        $region23: #{tpu_custom_call.1} parent=11 // pred_region
          _
        $region24: #{tpu_custom_call.1} parent=11 // pred_fallthru
          _
      $region12: #{tpu_custom_call.1} parent=5 // pred_fallthru
        _
      %p222 = scmp.lt.s32.totalorder %s15, 2
      // Predicated region
      $region25: #{tpu_custom_call.1} parent=5 // pred_check
        %p223 = pneg %p222
      $region26: #{tpu_custom_call.1} parent=5 // pred_check_branch
        %225 = sbr.rel (%p223) target = $region28
      $region27: #{tpu_custom_call.1} parent=5 // pred_region
        // Predicated region
        $region29: #{tpu_custom_call.1} parent=27 // pred_check
          %p226 = pneg %p49
        $region30: #{tpu_custom_call.1} parent=27 // pred_check_branch
          %228 = sbr.rel (%p226) target = $region32
        $region31: #{tpu_custom_call.1} parent=27 // pred_region
          %p229 = scmp.lt.s32.totalorder %s22, 1
          %s230 = scalar_select %p229, %s22, 1
          %p231 = scmp.lt.s32.totalorder %s23, 0
          %s232 = scalar_select %p231, %s23, 0
          %s233 = sadd.s32 %s232, %s230
          %s234 = smul.addr %s233, 8
          %s235 = scalar_lea.vmem %s0, %s234
        $region32: #{tpu_custom_call.1} parent=27 // pred_fallthru
          _
        // Predicated region
        $region33: #{tpu_custom_call.1} parent=27 // pred_check
          %p236 = pneg %p75
        $region34: #{tpu_custom_call.1} parent=27 // pred_check_branch
          %238 = sbr.rel (%p236) target = $region36
        $region35: #{tpu_custom_call.1} parent=27 // pred_region
          %p239 = scmp.lt.s32.totalorder %s22, 1
          %s240 = scalar_select %p239, %s22, 1
          %s241 = smul.addr %s240, 16
          %s242 = smul.addr %s241, 8
          %s243 = scalar_lea.vmem %s1, %s242
        $region36: #{tpu_custom_call.1} parent=27 // pred_fallthru
          _
        // Predicated region
        $region37: #{tpu_custom_call.1} parent=27 // pred_check
          %p244 = pneg %p101
        $region38: #{tpu_custom_call.1} parent=27 // pred_check_branch
          %246 = sbr.rel (%p244) target = $region40
        $region39: #{tpu_custom_call.1} parent=27 // pred_region
          %p247 = scmp.lt.s32.totalorder %s22, 1
          %s248 = scalar_select %p247, %s22, 1
          %s249 = smul.addr %s248, 16
          %s250 = smul.addr %s249, 8
          %s251 = scalar_lea.vmem %s2, %s250
        $region40: #{tpu_custom_call.1} parent=27 // pred_fallthru
          _
      $region28: #{tpu_custom_call.1} parent=5 // pred_fallthru
        _
      %p252 = scmp.le.s32.totalorder 1, %s15
      %p253 = scmp.lt.s32.totalorder %s15, 3
      %p254 = pnand %p252, %p253
      %p255 = pneg %p254
      // Predicated region
      $region41: #{tpu_custom_call.1} parent=5 // pred_check
        _
      $region42: #{tpu_custom_call.1} parent=5 // pred_check_branch
        %257 = sbr.rel (%p254) target = $region44
      $region43: #{tpu_custom_call.1} parent=5 // pred_region
        %s258 = ssub.s32 %s15, 1
        %p259 = scmp.lt.s32.totalorder %s24, 1
        %s260 = scalar_select %p259, %s24, 1
        %p261 = scmp.lt.s32.totalorder %s25, 0
        %s262 = scalar_select %p261, %s25, 0
        %s263 = sadd.s32 %s262, %s260
        %s264 = smul.addr %s263, 8
        %s265 = scalar_lea.vmem %s0, %s264
        %p266 = pneg %p55
        %p267 = pneg %p52
        %p268 = scmp.lt.s32.totalorder %s24, 1
        %s269 = scalar_select %p268, %s24, 1
        %s270 = smul.addr %s269, 16
        %s271 = smul.addr %s270, 8
        %s272 = scalar_lea.vmem %s1, %s271
        %p273 = pneg %p81
        %p274 = pneg %p78
        %p275 = scmp.lt.s32.totalorder %s24, 1
        %s276 = scalar_select %p275, %s24, 1
        %s277 = smul.addr %s276, 16
        %s278 = smul.addr %s277, 8
        %s279 = scalar_lea.vmem %s2, %s278
        %p280 = pneg %p107
        %p281 = pneg %p104
        %p282 = pneg %p128
        %p283 = pneg %p125
        %p284 = pneg %p149
        %p285 = pneg %p146
        %p286 = pneg %p170
        %p287 = pneg %p167
        %p288 = pneg %p198
        %p289 = pneg %p195
        %s290 = sand.u32 %s185, 1
        %s291 = scalar_lea.sflag [#allocation4], %s290
        %s292 = sand.u32 %s185, 1
        %s293 = smul.addr %s292, 8
        %s294 = scalar_lea.vmem [#allocation3], %s293
        %p295 = scmp.lt.s32.totalorder %s24, 1
        %s296 = scalar_select %p295, %s24, 1
        %p297 = scmp.lt.s32.totalorder %s25, 0
        %s298 = scalar_select %p297, %s25, 0
        %s299 = sadd.s32 %s298, %s296
        %s300 = smul.addr %s299, 8
        %s301 = scalar_lea.vmem %s0, %s300
        %p302 = scmp.lt.s32.totalorder %s24, 1
        %s303 = scalar_select %p302, %s24, 1
        %s304 = smul.addr %s303, 16
        %s305 = smul.addr %s304, 8
        %s306 = scalar_lea.vmem %s1, %s305
        %p307 = scmp.lt.s32.totalorder %s24, 1
        %s308 = scalar_select %p307, %s24, 1
        %s309 = smul.addr %s308, 16
        %s310 = smul.addr %s309, 8
        %s311 = scalar_lea.vmem %s2, %s310
        %v312 = vld [vmem:[%s301] sm:$0xff]
        %v313 = vld [vmem:[%s306] sm:$0xff]
        %v314 = vld [vmem:[%s306 + $0x8] sm:$0xff]
        %v315 = vld [vmem:[%s306 + $0x10] sm:$0xff]
        %v316 = vld [vmem:[%s306 + $0x18] sm:$0xff]
        %v317 = vld [vmem:[%s306 + $0x20] sm:$0xff]
        %v318 = vld [vmem:[%s306 + $0x28] sm:$0xff]
        %v319 = vld [vmem:[%s306 + $0x30] sm:$0xff]
        %v320 = vld [vmem:[%s306 + $0x38] sm:$0xff]
        %v321 = vld [vmem:[%s306 + $0x40] sm:$0xff]
        %v322 = vld [vmem:[%s306 + $0x48] sm:$0xff]
        %v323 = vld [vmem:[%s306 + $0x50] sm:$0xff]
        %v324 = vld [vmem:[%s306 + $0x58] sm:$0xff]
        %v325 = vld [vmem:[%s306 + $0x60] sm:$0xff]
        %v326 = vld [vmem:[%s306 + $0x68] sm:$0xff]
        %v327 = vld [vmem:[%s306 + $0x70] sm:$0xff]
        %v328 = vld [vmem:[%s306 + $0x78] sm:$0xff]
        %v329 = vld [vmem:[%s311] sm:$0xff]
        %v330 = vld [vmem:[%s311 + $0x8] sm:$0xff]
        %v331 = vld [vmem:[%s311 + $0x10] sm:$0xff]
        %v332 = vld [vmem:[%s311 + $0x18] sm:$0xff]
        %v333 = vld [vmem:[%s311 + $0x20] sm:$0xff]
        %v334 = vld [vmem:[%s311 + $0x28] sm:$0xff]
        %v335 = vld [vmem:[%s311 + $0x30] sm:$0xff]
        %v336 = vld [vmem:[%s311 + $0x38] sm:$0xff]
        %v337 = vld [vmem:[%s311 + $0x40] sm:$0xff]
        %v338 = vld [vmem:[%s311 + $0x48] sm:$0xff]
        %v339 = vld [vmem:[%s311 + $0x50] sm:$0xff]
        %v340 = vld [vmem:[%s311 + $0x58] sm:$0xff]
        %v341 = vld [vmem:[%s311 + $0x60] sm:$0xff]
        %v342 = vld [vmem:[%s311 + $0x68] sm:$0xff]
        %v343 = vld [vmem:[%s311 + $0x70] sm:$0xff]
        %v344 = vld [vmem:[%s311 + $0x78] sm:$0xff]
        %v345 = vld [vmem:[%s3] sm:$0xff]
        %v346 = vld [vmem:[%s3 + $0x8] sm:$0xff]
        %v347 = vld [vmem:[%s3 + $0x10] sm:$0xff]
        %v348 = vld [vmem:[%s3 + $0x18] sm:$0xff]
        %vm349 = vcmask 261120
        %v351 = vsel %vm349, %v312, 0
        %353 = vmatpush.msra.mxu0 0.0
        %354 = vmatpush.msra.mxu0 0.0
        %355 = vmatpush.msra.mxu0 0.0
        %356 = vmatpush.msra.mxu0 0.0
        %357 = vmatpush.msra.mxu0 0.0
        %358 = vmatpush.msra.mxu0 0.0
        %359 = vmatpush.msra.mxu0 0.0
        %360 = vmatpush.msra.mxu0 0.0
        %361 = vmatpush.msra.mxu0 0.0
        %362 = vmatpush.msra.mxu0 0.0
        %363 = vmatpush.msra.mxu0 0.0
        %364 = vmatpush.msra.mxu0 0.0
        %365 = vmatpush.msra.mxu0 %v348
        %366 = vmatpush.msra.mxu0 %v347
        %367 = vmatpush.msra.mxu0 %v346
        %368 = vmatpush.msra.mxu0 %v345
        %369 = vmatmul.f32.gmra.mxu0 %v351
        %v370 = vpop.f32.mrf.mxu0
        %v371 = vadd.f32 0.0, %v370
        %372 = vdwg.mxu0
        %v373 = vlaneseq
        %v374 = vand.u32 %v373, 127
        %vm375 = vcmp.lt.s32.totalorder %v374, 8
        %v376 = vsel %vm375, 0.0, -1e+30
        %vm377 = vcmask 130048
        %v379 = vsel %vm377, %v371, 0
        %v382 = vsel %vm377, %v313, 0
        %v385 = vsel %vm377, %v314, 0
        %v388 = vsel %vm377, %v315, 0
        %v391 = vsel %vm377, %v316, 0
        %v394 = vsel %vm377, %v317, 0
        %v397 = vsel %vm377, %v318, 0
        %v400 = vsel %vm377, %v319, 0
        %v403 = vsel %vm377, %v320, 0
        %v406 = vsel %vm377, %v321, 0
        %v409 = vsel %vm377, %v322, 0
        %v412 = vsel %vm377, %v323, 0
        %v415 = vsel %vm377, %v324, 0
        %v418 = vsel %vm377, %v325, 0
        %v421 = vsel %vm377, %v326, 0
        %v424 = vsel %vm377, %v327, 0
        %v427 = vsel %vm377, %v328, 0
        %429 = vmatpush.xpose.msra.mxu0 %v427
        %430 = vmatpush.xpose.msra.mxu0 %v424
        %431 = vmatpush.xpose.msra.mxu0 %v421
        %432 = vmatpush.xpose.msra.mxu0 %v418
        %433 = vmatpush.xpose.msra.mxu0 %v415
        %434 = vmatpush.xpose.msra.mxu0 %v412
        %435 = vmatpush.xpose.msra.mxu0 %v409
        %436 = vmatpush.xpose.msra.mxu0 %v406
        %437 = vmatpush.xpose.msra.mxu0 %v403
        %438 = vmatpush.xpose.msra.mxu0 %v400
        %439 = vmatpush.xpose.msra.mxu0 %v397
        %440 = vmatpush.xpose.msra.mxu0 %v394
        %441 = vmatpush.xpose.msra.mxu0 %v391
        %442 = vmatpush.xpose.msra.mxu0 %v388
        %443 = vmatpush.xpose.msra.mxu0 %v385
        %444 = vmatpush.xpose.msra.mxu0 %v382
        %445 = vmatmul.f32.gmra.mxu0 %v379
        %v446 = vpop.f32.mrf.mxu0
        %v447 = vadd.f32 %v376, %v446
        %448 = vdwg.mxu0
        %449 = vmax.xlane.f32.xlu0 %v447
        %v450 = vpop.xlane.xlu0 %449
        %v451 = vsub.f32 %v447, %v450
        %v452 = vmul.f32 %v451, 1.442695
        %v453 = vpow.pop %v452
        %454 = vadd.xlane.f32.xlu0 %v453
        %v455 = vpop.xlane.xlu0 %454
        %456 = vmatpush.msra.mxu0 %v344
        %457 = vmatpush.msra.mxu0 %v343
        %458 = vmatpush.msra.mxu0 %v342
        %459 = vmatpush.msra.mxu0 %v341
        %460 = vmatpush.msra.mxu0 %v340
        %461 = vmatpush.msra.mxu0 %v339
        %462 = vmatpush.msra.mxu0 %v338
        %463 = vmatpush.msra.mxu0 %v337
        %464 = vmatpush.msra.mxu0 %v336
        %465 = vmatpush.msra.mxu0 %v335
        %466 = vmatpush.msra.mxu0 %v334
        %467 = vmatpush.msra.mxu0 %v333
        %468 = vmatpush.msra.mxu0 %v332
        %469 = vmatpush.msra.mxu0 %v331
        %470 = vmatpush.msra.mxu0 %v330
        %471 = vmatpush.msra.mxu0 %v329
        %472 = vmatmul.f32.gmra.mxu0 %v453
        %v473 = vpop.f32.mrf.mxu0
        %v474 = vadd.f32 0.0, %v473
        %475 = vdwg.mxu0
        %v476 = vrcp.pop %v455
        %v477 = vmul.f32 %v474, %v476
        %478 = vst.msk [vmem:[#allocation2] sm:$0xff] %vm377, %v477
        %479 = vrot.lane.b32.xlu0 %v371, 112
        %v480 = vpop.permute.xlu0 %479
        %481 = vrot.lane.b32.xlu0 %v313, 112
        %v482 = vpop.permute.xlu0 %481
        %483 = vrot.lane.b32.xlu0 %v314, 112
        %v484 = vpop.permute.xlu0 %483
        %485 = vrot.lane.b32.xlu0 %v315, 112
        %v486 = vpop.permute.xlu0 %485
        %487 = vrot.lane.b32.xlu0 %v316, 112
        %v488 = vpop.permute.xlu0 %487
        %489 = vrot.lane.b32.xlu0 %v317, 112
        %v490 = vpop.permute.xlu0 %489
        %491 = vrot.lane.b32.xlu0 %v318, 112
        %v492 = vpop.permute.xlu0 %491
        %493 = vrot.lane.b32.xlu0 %v319, 112
        %v494 = vpop.permute.xlu0 %493
        %495 = vrot.lane.b32.xlu0 %v320, 112
        %v496 = vpop.permute.xlu0 %495
        %497 = vrot.lane.b32.xlu0 %v321, 112
        %v498 = vpop.permute.xlu0 %497
        %499 = vrot.lane.b32.xlu0 %v322, 112
        %v500 = vpop.permute.xlu0 %499
        %501 = vrot.lane.b32.xlu0 %v323, 112
        %v502 = vpop.permute.xlu0 %501
        %503 = vrot.lane.b32.xlu0 %v324, 112
        %v504 = vpop.permute.xlu0 %503
        %505 = vrot.lane.b32.xlu0 %v325, 112
        %v506 = vpop.permute.xlu0 %505
        %507 = vrot.lane.b32.xlu0 %v326, 112
        %v508 = vpop.permute.xlu0 %507
        %509 = vrot.lane.b32.xlu0 %v327, 112
        %v510 = vpop.permute.xlu0 %509
        %511 = vrot.lane.b32.xlu0 %v328, 112
        %v512 = vpop.permute.xlu0 %511
        %v513 = vsel %vm377, %v480, 0
        %v515 = vsel %vm377, %v482, 0
        %v517 = vsel %vm377, %v484, 0
        %v519 = vsel %vm377, %v486, 0
        %v521 = vsel %vm377, %v488, 0
        %v523 = vsel %vm377, %v490, 0
        %v525 = vsel %vm377, %v492, 0
        %v527 = vsel %vm377, %v494, 0
        %v529 = vsel %vm377, %v496, 0
        %v531 = vsel %vm377, %v498, 0
        %v533 = vsel %vm377, %v500, 0
        %v535 = vsel %vm377, %v502, 0
        %v537 = vsel %vm377, %v504, 0
        %v539 = vsel %vm377, %v506, 0
        %v541 = vsel %vm377, %v508, 0
        %v543 = vsel %vm377, %v510, 0
        %v545 = vsel %vm377, %v512, 0
        %547 = vmatpush.xpose.msra.mxu0 %v545
        %548 = vmatpush.xpose.msra.mxu0 %v543
        %549 = vmatpush.xpose.msra.mxu0 %v541
        %550 = vmatpush.xpose.msra.mxu0 %v539
        %551 = vmatpush.xpose.msra.mxu0 %v537
        %552 = vmatpush.xpose.msra.mxu0 %v535
        %553 = vmatpush.xpose.msra.mxu0 %v533
        %554 = vmatpush.xpose.msra.mxu0 %v531
        %555 = vmatpush.xpose.msra.mxu0 %v529
        %556 = vmatpush.xpose.msra.mxu0 %v527
        %557 = vmatpush.xpose.msra.mxu0 %v525
        %558 = vmatpush.xpose.msra.mxu0 %v523
        %559 = vmatpush.xpose.msra.mxu0 %v521
        %560 = vmatpush.xpose.msra.mxu0 %v519
        %561 = vmatpush.xpose.msra.mxu0 %v517
        %562 = vmatpush.xpose.msra.mxu0 %v515
        %563 = vmatmul.f32.gmra.mxu0 %v513
        %v564 = vpop.f32.mrf.mxu0
        %v565 = vadd.f32 %v376, %v564
        %566 = vdwg.mxu0
        %567 = vmax.xlane.f32.xlu0 %v565
        %v568 = vpop.xlane.xlu0 %567
        %v569 = vsub.f32 %v565, %v568
        %v570 = vmul.f32 %v569, 1.442695
        %v571 = vpow.pop %v570
        %572 = vadd.xlane.f32.xlu0 %v571
        %v573 = vpop.xlane.xlu0 %572
        %590 = vrot.lane.b32.xlu0 %v329, 112
        %v591 = vpop.permute.xlu0 %590
        %592 = vrot.lane.b32.xlu0 %v330, 112
        %v593 = vpop.permute.xlu0 %592
        %594 = vrot.lane.b32.xlu0 %v331, 112
        %v595 = vpop.permute.xlu0 %594
        %596 = vrot.lane.b32.xlu0 %v332, 112
        %v597 = vpop.permute.xlu0 %596
        %598 = vrot.lane.b32.xlu0 %v333, 112
        %v599 = vpop.permute.xlu0 %598
        %600 = vrot.lane.b32.xlu0 %v334, 112
        %v601 = vpop.permute.xlu0 %600
        %602 = vrot.lane.b32.xlu0 %v335, 112
        %v603 = vpop.permute.xlu0 %602
        %604 = vrot.lane.b32.xlu0 %v336, 112
        %v605 = vpop.permute.xlu0 %604
        %606 = vrot.lane.b32.xlu0 %v337, 112
        %v607 = vpop.permute.xlu0 %606
        %608 = vrot.lane.b32.xlu0 %v338, 112
        %v609 = vpop.permute.xlu0 %608
        %610 = vrot.lane.b32.xlu0 %v339, 112
        %v611 = vpop.permute.xlu0 %610
        %612 = vrot.lane.b32.xlu0 %v340, 112
        %v613 = vpop.permute.xlu0 %612
        %614 = vrot.lane.b32.xlu0 %v341, 112
        %v615 = vpop.permute.xlu0 %614
        %616 = vrot.lane.b32.xlu0 %v342, 112
        %v617 = vpop.permute.xlu0 %616
        %618 = vrot.lane.b32.xlu0 %v343, 112
        %v619 = vpop.permute.xlu0 %618
        %620 = vrot.lane.b32.xlu0 %v344, 112
        %v621 = vpop.permute.xlu0 %620
        %638 = vmatpush.msra.mxu0 %v621
        %639 = vmatpush.msra.mxu0 %v619
        %640 = vmatpush.msra.mxu0 %v617
        %641 = vmatpush.msra.mxu0 %v615
        %642 = vmatpush.msra.mxu0 %v613
        %643 = vmatpush.msra.mxu0 %v611
        %644 = vmatpush.msra.mxu0 %v609
        %645 = vmatpush.msra.mxu0 %v607
        %646 = vmatpush.msra.mxu0 %v605
        %647 = vmatpush.msra.mxu0 %v603
        %648 = vmatpush.msra.mxu0 %v601
        %649 = vmatpush.msra.mxu0 %v599
        %650 = vmatpush.msra.mxu0 %v597
        %651 = vmatpush.msra.mxu0 %v595
        %652 = vmatpush.msra.mxu0 %v593
        %653 = vmatpush.msra.mxu0 %v591
        %654 = vmatmul.f32.gmra.mxu0 %v571
        %v655 = vpop.f32.mrf.mxu0
        %v656 = vadd.f32 0.0, %v655
        %657 = vdwg.mxu0
        %v658 = vrcp.pop %v573
        %v659 = vmul.f32 %v656, %v658
        %661 = vrot.lane.b32.xlu0 %v659, 16
        %v662 = vpop.permute.xlu0 %661
        %vm664 = vcmask 261248
        %665 = vst.msk [vmem:[#allocation2] sm:$0xff] %vm664, %v662
        %v666 = vld [vmem:[#allocation2] sm:$0xff]
        %v667 = vld [vmem:[%s4] sm:$0xff]
        %v668 = vld [vmem:[%s4 + $0x8] sm:$0xff]
        %v669 = vld [vmem:[%s4 + $0x10] sm:$0xff]
        %v670 = vld [vmem:[%s4 + $0x18] sm:$0xff]
        %v671 = vld [vmem:[%s5] sm:$0x1]
        %v673 = vperm.slane %v671, 0
        %v676 = vsel %vm349, %v666, 0
        %678 = vmatpush.msra.mxu0 0.0
        %679 = vmatpush.msra.mxu0 0.0
        %680 = vmatpush.msra.mxu0 0.0
        %681 = vmatpush.msra.mxu0 0.0
        %682 = vmatpush.msra.mxu0 0.0
        %683 = vmatpush.msra.mxu0 0.0
        %684 = vmatpush.msra.mxu0 0.0
        %685 = vmatpush.msra.mxu0 0.0
        %686 = vmatpush.msra.mxu0 0.0
        %687 = vmatpush.msra.mxu0 0.0
        %688 = vmatpush.msra.mxu0 0.0
        %689 = vmatpush.msra.mxu0 0.0
        %690 = vmatpush.msra.mxu0 %v670
        %691 = vmatpush.msra.mxu0 %v669
        %692 = vmatpush.msra.mxu0 %v668
        %693 = vmatpush.msra.mxu0 %v667
        %694 = vmatmul.f32.gmra.mxu0 %v676
        %v695 = vpop.f32.mrf.mxu0
        %v696 = vadd.f32 %v673, %v695
        %697 = vdwg.mxu0
        %698 = vst.msk [vmem:[%s294] sm:$0xff] %vm349, %v696
        %s699 = sand.u32 %s185, 1
        %s700 = scalar_lea.sflag [#allocation4], %s699
        %s701 = sand.u32 %s185, 1
        %s702 = smul.addr %s701, 8
        %s703 = scalar_lea.vmem [#allocation3], %s702
        // Predicated region
        $region45: #{tpu_custom_call.1} parent=43 // pred_check
          %p704 = pneg %p195
        $region46: #{tpu_custom_call.1} parent=43 // pred_check_branch
          %706 = sbr.rel (%p704) target = $region48
        $region47: #{tpu_custom_call.1} parent=43 // pred_region
          %708 = vsyncadd %s700, 0
          %s709 = sadd.s32 %s25, %s24
          %s710 = smul.addr %s709, 8
          %s711 = scalar_lea.hbm %s6, %s710
          %s713 = sshll.u32 %s703, 4
          %s714 = int_to_ptr.vmem [resolvable:$true] %s713
          %s715 = sshll.u32 %s711, 4
          %s716 = int_to_ptr.hbm [resolvable:$true] %s715
          %718 = dma.vmem_to_hbm [thread:$0]  %s714, 128, %s716, %s700
        $region48: #{tpu_custom_call.1} parent=43 // pred_fallthru
          _
      $region44: #{tpu_custom_call.1} parent=5 // pred_fallthru
        _
      %p719 = scmp.le.s32.totalorder 2, %s15
      // Predicated region
      $region49: #{tpu_custom_call.1} parent=5 // pred_check
        %p720 = pneg %p719
      $region50: #{tpu_custom_call.1} parent=5 // pred_check_branch
        %722 = sbr.rel (%p720) target = $region52
      $region51: #{tpu_custom_call.1} parent=5 // pred_region
        %s723 = ssub.s32 %s15, 2
        // Predicated region
        $region53: #{tpu_custom_call.1} parent=51 // pred_check
          %p724 = pneg %p201
        $region54: #{tpu_custom_call.1} parent=51 // pred_check_branch
          %726 = sbr.rel (%p724) target = $region56
        $region55: #{tpu_custom_call.1} parent=51 // pred_region
          %s727 = sand.u32 %s186, 1
          %s728 = scalar_lea.sflag [#allocation4], %s727
          %s729 = sand.u32 %s186, 1
          %s730 = smul.addr %s729, 8
          %s731 = scalar_lea.vmem [#allocation3], %s730
          %733 = dma.done %s728, 128
        $region56: #{tpu_custom_call.1} parent=51 // pred_fallthru
          _
      $region52: #{tpu_custom_call.1} parent=5 // pred_fallthru
        _
    $region6: #{tpu_custom_call.1} parent=1 // loop_footer
      %s19 = sadd.s32 1, %s15
    $region7: #{tpu_custom_call.1} parent=1 // loop_footer_branch
      %14 = sbr.rel target = $region3
    $region8: #{tpu_custom_call.1} parent=1 // loop_exit
      _
    %734 = vsyncpa [#allocation4], 1
    %s735 = scalar_lea.sflag [#allocation4], 1
    %736 = vsyncpa %s735, 1

// kernel: tpu_custom_call.1
$region0: #{tpu_custom_call.1}
  #allocation0 [shape = 'u32[]', space=smem, size = 0x4, offset = 0x4, fixed_abs, tag = 'smem constant byte address 0x4 - core index']
  #allocation1 [shape = 'u32[72,128]{1,0:T(1,128)}', space=vmem, size = 0x9000, scoped, tag = 'internal scratch']
  #allocation2 [shape = 'f32[8,32]{1,0:T(8,128)}', space=vmem, size = 0x1000, scoped, tag = 'scratch operand']
  %s0 = inlined_call_operand.vmem [shape: f32[2,8,32], index: 0, kind: input, shape index: {}]
  %s1 = inlined_call_operand.vmem [shape: f32[2,128,32], index: 1, kind: input, shape index: {}]
  %s2 = inlined_call_operand.vmem [shape: f32[2,128,32], index: 2, kind: input, shape index: {}]
  %s3 = inlined_call_operand.vmem [shape: f32[32,32], index: 3, kind: input, shape index: {}]
  %s4 = inlined_call_operand.vmem [shape: f32[32,32], index: 4, kind: input, shape index: {}]
  %s5 = inlined_call_operand.vmem [shape: f32[1,32], index: 5, kind: input, shape index: {}]
  %s6 = inlined_call_operand.hbm [shape: f32[2,8,32], index: 6, kind: output, shape index: {}]
  %s7 = sld [smem:[#allocation0]]
  $region57: #{tpu_custom_call.1} parent=0
    _
  %s9 = ssub.s32 1, %s7
  %s10 = scalar_select 0, %s9, %s7
  $region1: #{tpu_custom_call.1} parent=0
    #allocation3 [shape = 'u8[8192]{0}', space=vmem, size = 0x2000, scoped, tag = 'output window, operand 0']
    #allocation4 [shape = 's32[2]{0}', space=sflag, size = 0x8, scoped, tag = 'scoped memory for tpu_custom_call.1']
    %11 = vsyncpa [#allocation4], 0
    %s12 = scalar_lea.sflag [#allocation4], 1
    %13 = vsyncpa %s12, 0
    loop: start=0, step=1, limit=4
    $region2: #{tpu_custom_call.1} parent=1 // loop_pre_header
      _
    $region3: #{tpu_custom_call.1} parent=1 // loop_header
      %s15 = sphi 0, %s19
      %p16 = scmp.ge.s32.totalorder %s15, 4
      %s22 = sphi 0, %s34
      %s23 = sphi 0, %s30
      %s24 = sphi 0, %s22
      %s25 = sphi 0, %s23
      %s26 = sphi 0, %s24
      %s27 = sphi 0, %s25
      %s39 = sphi 0, %s41
      %s42 = sphi 0, %s39
      %s43 = sphi 0, %s42
      %s59 = sphi 0, %s43
      %s65 = sphi 0, %s67
      %s68 = sphi 0, %s65
      %s69 = sphi 0, %s68
      %s85 = sphi 0, %s69
      %s91 = sphi 0, %s93
      %s94 = sphi 0, %s91
      %s95 = sphi 0, %s94
      %s111 = sphi 0, %s95
      %s115 = sphi 0, %s115
      %s117 = sphi 0, %s115
      %s118 = sphi 0, %s117
      %s132 = sphi 0, %s118
      %s136 = sphi 0, %s136
      %s138 = sphi 0, %s136
      %s139 = sphi 0, %s138
      %s153 = sphi 0, %s139
      %s157 = sphi 0, %s157
      %s159 = sphi 0, %s157
      %s160 = sphi 0, %s159
      %s174 = sphi 0, %s160
      %s182 = sphi 0, %s184
      %s185 = sphi 0, %s182
      %s186 = sphi 0, %s185
      %s202 = sphi 0, %s186
    $region4: #{tpu_custom_call.1} parent=1 // loop_header_branch
      %18 = sbr.rel (%p16) target = $region8
    $region5: #{tpu_custom_call.1} parent=1 // loop_body
      %s20 = ssub.s32 %s15, 1
      %s21 = ssub.s32 %s15, 2
      %s28 = sadd.s32 1, %s23
      %p29 = scmp.ge.s32.totalorder %s28, 1
      %s30 = scalar_select %p29, 0, %s28
      %s31 = sadd.s32 1, %s22
      %s32 = scalar_select %p29, %s31, %s22
      %p33 = scmp.ge.s32.totalorder %s32, 2
      %s34 = scalar_select %p33, 0, %s32
      %s35 = ssub.s32 %s22, %s34
      %s36 = ssub.s32 %s23, %s30
      %s37 = sor.u32 %s35, %s36
      %p38 = scmp.eq.s32.totalorder %s37, 0
      %s40 = sadd.s32 %s39, 1
      %s41 = scalar_select %p38, %s39, %s40
      %p44 = pneg %p38
      %p45 = scmp.eq.s32.totalorder %s15, 1
      %p46 = por %p44, %p45
      %p47 = scmp.ne.s32.totalorder %s39, %s42
      %p48 = scmp.eq.s32.totalorder %s15, 0
      %p49 = por %p47, %p48
      %p50 = scmp.ne.s32.totalorder %s39, %s42
      %p51 = scmp.eq.s32.totalorder %s20, 1
      %p52 = por %p50, %p51
      %p53 = scmp.ne.s32.totalorder %s42, %s43
      %p54 = scmp.eq.s32.totalorder %s20, 0
      %p55 = por %p53, %p54
      %p56 = scmp.ne.s32.totalorder %s42, %s43
      %p57 = scmp.eq.s32.totalorder %s21, 1
      %p58 = por %p56, %p57
      %p60 = scmp.ne.s32.totalorder %s43, %s59
      %p61 = scmp.eq.s32.totalorder %s21, 0
      %p62 = por %p60, %p61
      %s63 = ssub.s32 %s22, %s34
      %p64 = scmp.eq.s32.totalorder %s63, 0
      %s66 = sadd.s32 %s65, 1
      %s67 = scalar_select %p64, %s65, %s66
      %p70 = pneg %p64
      %p71 = scmp.eq.s32.totalorder %s15, 1
      %p72 = por %p70, %p71
      %p73 = scmp.ne.s32.totalorder %s65, %s68
      %p74 = scmp.eq.s32.totalorder %s15, 0
      %p75 = por %p73, %p74
      %p76 = scmp.ne.s32.totalorder %s65, %s68
      %p77 = scmp.eq.s32.totalorder %s20, 1
      %p78 = por %p76, %p77
      %p79 = scmp.ne.s32.totalorder %s68, %s69
      %p80 = scmp.eq.s32.totalorder %s20, 0
      %p81 = por %p79, %p80
      %p82 = scmp.ne.s32.totalorder %s68, %s69
      %p83 = scmp.eq.s32.totalorder %s21, 1
      %p84 = por %p82, %p83
      %p86 = scmp.ne.s32.totalorder %s69, %s85
      %p87 = scmp.eq.s32.totalorder %s21, 0
      %p88 = por %p86, %p87
      %s89 = ssub.s32 %s22, %s34
      %p90 = scmp.eq.s32.totalorder %s89, 0
      %s92 = sadd.s32 %s91, 1
      %s93 = scalar_select %p90, %s91, %s92
      %p96 = pneg %p90
      %p97 = scmp.eq.s32.totalorder %s15, 1
      %p98 = por %p96, %p97
      %p99 = scmp.ne.s32.totalorder %s91, %s94
      %p100 = scmp.eq.s32.totalorder %s15, 0
      %p101 = por %p99, %p100
      %p102 = scmp.ne.s32.totalorder %s91, %s94
      %p103 = scmp.eq.s32.totalorder %s20, 1
      %p104 = por %p102, %p103
      %p105 = scmp.ne.s32.totalorder %s94, %s95
      %p106 = scmp.eq.s32.totalorder %s20, 0
      %p107 = por %p105, %p106
      %p108 = scmp.ne.s32.totalorder %s94, %s95
      %p109 = scmp.eq.s32.totalorder %s21, 1
      %p110 = por %p108, %p109
      %p112 = scmp.ne.s32.totalorder %s95, %s111
      %p113 = scmp.eq.s32.totalorder %s21, 0
      %p114 = por %p112, %p113
      %s116 = sadd.s32 %s115, 1
      %p119 = scmp.eq.s32.totalorder %s15, 1
      %p120 = scmp.ne.s32.totalorder %s115, %s117
      %p121 = scmp.eq.s32.totalorder %s15, 0
      %p122 = por %p120, %p121
      %p123 = scmp.ne.s32.totalorder %s115, %s117
      %p124 = scmp.eq.s32.totalorder %s20, 1
      %p125 = por %p123, %p124
      %p126 = scmp.ne.s32.totalorder %s117, %s118
      %p127 = scmp.eq.s32.totalorder %s20, 0
      %p128 = por %p126, %p127
      %p129 = scmp.ne.s32.totalorder %s117, %s118
      %p130 = scmp.eq.s32.totalorder %s21, 1
      %p131 = por %p129, %p130
      %p133 = scmp.ne.s32.totalorder %s118, %s132
      %p134 = scmp.eq.s32.totalorder %s21, 0
      %p135 = por %p133, %p134
      %s137 = sadd.s32 %s136, 1
      %p140 = scmp.eq.s32.totalorder %s15, 1
      %p141 = scmp.ne.s32.totalorder %s136, %s138
      %p142 = scmp.eq.s32.totalorder %s15, 0
      %p143 = por %p141, %p142
      %p144 = scmp.ne.s32.totalorder %s136, %s138
      %p145 = scmp.eq.s32.totalorder %s20, 1
      %p146 = por %p144, %p145
      %p147 = scmp.ne.s32.totalorder %s138, %s139
      %p148 = scmp.eq.s32.totalorder %s20, 0
      %p149 = por %p147, %p148
      %p150 = scmp.ne.s32.totalorder %s138, %s139
      %p151 = scmp.eq.s32.totalorder %s21, 1
      %p152 = por %p150, %p151
      %p154 = scmp.ne.s32.totalorder %s139, %s153
      %p155 = scmp.eq.s32.totalorder %s21, 0
      %p156 = por %p154, %p155
      %s158 = sadd.s32 %s157, 1
      %p161 = scmp.eq.s32.totalorder %s15, 1
      %p162 = scmp.ne.s32.totalorder %s157, %s159
      %p163 = scmp.eq.s32.totalorder %s15, 0
      %p164 = por %p162, %p163
      %p165 = scmp.ne.s32.totalorder %s157, %s159
      %p166 = scmp.eq.s32.totalorder %s20, 1
      %p167 = por %p165, %p166
      %p168 = scmp.ne.s32.totalorder %s159, %s160
      %p169 = scmp.eq.s32.totalorder %s20, 0
      %p170 = por %p168, %p169
      %p171 = scmp.ne.s32.totalorder %s159, %s160
      %p172 = scmp.eq.s32.totalorder %s21, 1
      %p173 = por %p171, %p172
      %p175 = scmp.ne.s32.totalorder %s160, %s174
      %p176 = scmp.eq.s32.totalorder %s21, 0
      %p177 = por %p175, %p176
      %s178 = ssub.s32 %s22, %s34
      %s179 = ssub.s32 %s23, %s30
      %s180 = sor.u32 %s178, %s179
      %p181 = scmp.eq.s32.totalorder %s180, 0
      %s183 = sadd.s32 %s182, 1
      %s184 = scalar_select %p181, %s182, %s183
      %p187 = pneg %p181
      %p188 = scmp.eq.s32.totalorder %s15, 1
      %p189 = por %p187, %p188
      %p190 = scmp.ne.s32.totalorder %s182, %s185
      %p191 = scmp.eq.s32.totalorder %s15, 0
      %p192 = por %p190, %p191
      %p193 = scmp.ne.s32.totalorder %s182, %s185
      %p194 = scmp.eq.s32.totalorder %s20, 1
      %p195 = por %p193, %p194
      %p196 = scmp.ne.s32.totalorder %s185, %s186
      %p197 = scmp.eq.s32.totalorder %s20, 0
      %p198 = por %p196, %p197
      %p199 = scmp.ne.s32.totalorder %s185, %s186
      %p200 = scmp.eq.s32.totalorder %s21, 1
      %p201 = por %p199, %p200
      %p203 = scmp.ne.s32.totalorder %s186, %s202
      %p204 = scmp.eq.s32.totalorder %s21, 0
      %p205 = por %p203, %p204
      %p206 = scmp.le.s32.totalorder 1, %s15
      %p207 = scmp.lt.s32.totalorder %s15, 3
      %p208 = pnand %p206, %p207
      %p209 = pneg %p208
      // Predicated region
      $region9: #{tpu_custom_call.1} parent=5 // pred_check
        _
      $region10: #{tpu_custom_call.1} parent=5 // pred_check_branch
        %211 = sbr.rel (%p208) target = $region12
      $region11: #{tpu_custom_call.1} parent=5 // pred_region
        %s212 = ssub.s32 %s15, 1
        // Predicated region
        $region13: #{tpu_custom_call.1} parent=11 // pred_check
          %p213 = pneg %p128
        $region14: #{tpu_custom_call.1} parent=11 // pred_check_branch
          %215 = sbr.rel (%p213) target = $region16
        $region15: #{tpu_custom_call.1} parent=11 // pred_region
          _
        $region16: #{tpu_custom_call.1} parent=11 // pred_fallthru
          _
        // Predicated region
        $region17: #{tpu_custom_call.1} parent=11 // pred_check
          %p216 = pneg %p149
        $region18: #{tpu_custom_call.1} parent=11 // pred_check_branch
          %218 = sbr.rel (%p216) target = $region20
        $region19: #{tpu_custom_call.1} parent=11 // pred_region
          _
        $region20: #{tpu_custom_call.1} parent=11 // pred_fallthru
          _
        // Predicated region
        $region21: #{tpu_custom_call.1} parent=11 // pred_check
          %p219 = pneg %p170
        $region22: #{tpu_custom_call.1} parent=11 // pred_check_branch
          %221 = sbr.rel (%p219) target = $region24
        $region23: #{tpu_custom_call.1} parent=11 // pred_region
          _
        $region24: #{tpu_custom_call.1} parent=11 // pred_fallthru
          _
      $region12: #{tpu_custom_call.1} parent=5 // pred_fallthru
        _
      %p222 = scmp.lt.s32.totalorder %s15, 2
      // Predicated region
      $region25: #{tpu_custom_call.1} parent=5 // pred_check
        %p223 = pneg %p222
      $region26: #{tpu_custom_call.1} parent=5 // pred_check_branch
        %225 = sbr.rel (%p223) target = $region28
      $region27: #{tpu_custom_call.1} parent=5 // pred_region
        // Predicated region
        $region29: #{tpu_custom_call.1} parent=27 // pred_check
          %p226 = pneg %p49
        $region30: #{tpu_custom_call.1} parent=27 // pred_check_branch
          %228 = sbr.rel (%p226) target = $region32
        $region31: #{tpu_custom_call.1} parent=27 // pred_region
          %p229 = scmp.lt.s32.totalorder %s22, 1
          %s230 = scalar_select %p229, %s22, 1
          %p231 = scmp.lt.s32.totalorder %s23, 0
          %s232 = scalar_select %p231, %s23, 0
          %s233 = sadd.s32 %s232, %s230
          %s234 = smul.addr %s233, 8
          %s235 = scalar_lea.vmem %s0, %s234
        $region32: #{tpu_custom_call.1} parent=27 // pred_fallthru
          _
        // Predicated region
        $region33: #{tpu_custom_call.1} parent=27 // pred_check
          %p236 = pneg %p75
        $region34: #{tpu_custom_call.1} parent=27 // pred_check_branch
          %238 = sbr.rel (%p236) target = $region36
        $region35: #{tpu_custom_call.1} parent=27 // pred_region
          %p239 = scmp.lt.s32.totalorder %s22, 1
          %s240 = scalar_select %p239, %s22, 1
          %s241 = smul.addr %s240, 16
          %s242 = smul.addr %s241, 8
          %s243 = scalar_lea.vmem %s1, %s242
        $region36: #{tpu_custom_call.1} parent=27 // pred_fallthru
          _
        // Predicated region
        $region37: #{tpu_custom_call.1} parent=27 // pred_check
          %p244 = pneg %p101
        $region38: #{tpu_custom_call.1} parent=27 // pred_check_branch
          %246 = sbr.rel (%p244) target = $region40
        $region39: #{tpu_custom_call.1} parent=27 // pred_region
          %p247 = scmp.lt.s32.totalorder %s22, 1
          %s248 = scalar_select %p247, %s22, 1
          %s249 = smul.addr %s248, 16
          %s250 = smul.addr %s249, 8
          %s251 = scalar_lea.vmem %s2, %s250
        $region40: #{tpu_custom_call.1} parent=27 // pred_fallthru
          _
      $region28: #{tpu_custom_call.1} parent=5 // pred_fallthru
        _
      %p252 = scmp.le.s32.totalorder 1, %s15
      %p253 = scmp.lt.s32.totalorder %s15, 3
      %p254 = pnand %p252, %p253
      %p255 = pneg %p254
      // Predicated region
      $region41: #{tpu_custom_call.1} parent=5 // pred_check
        _
      $region42: #{tpu_custom_call.1} parent=5 // pred_check_branch
        %257 = sbr.rel (%p254) target = $region44
      $region43: #{tpu_custom_call.1} parent=5 // pred_region
        %s258 = ssub.s32 %s15, 1
        %p259 = scmp.lt.s32.totalorder %s24, 1
        %s260 = scalar_select %p259, %s24, 1
        %p261 = scmp.lt.s32.totalorder %s25, 0
        %s262 = scalar_select %p261, %s25, 0
        %s263 = sadd.s32 %s262, %s260
        %s264 = smul.addr %s263, 8
        %s265 = scalar_lea.vmem %s0, %s264
        %p266 = pneg %p55
        %p267 = pneg %p52
        %p268 = scmp.lt.s32.totalorder %s24, 1
        %s269 = scalar_select %p268, %s24, 1
        %s270 = smul.addr %s269, 16
        %s271 = smul.addr %s270, 8
        %s272 = scalar_lea.vmem %s1, %s271
        %p273 = pneg %p81
        %p274 = pneg %p78
        %p275 = scmp.lt.s32.totalorder %s24, 1
        %s276 = scalar_select %p275, %s24, 1
        %s277 = smul.addr %s276, 16
        %s278 = smul.addr %s277, 8
        %s279 = scalar_lea.vmem %s2, %s278
        %p280 = pneg %p107
        %p281 = pneg %p104
        %p282 = pneg %p128
        %p283 = pneg %p125
        %p284 = pneg %p149
        %p285 = pneg %p146
        %p286 = pneg %p170
        %p287 = pneg %p167
        %p288 = pneg %p198
        %p289 = pneg %p195
        %s290 = sand.u32 %s185, 1
        %s291 = scalar_lea.sflag [#allocation4], %s290
        %s292 = sand.u32 %s185, 1
        %s293 = smul.addr %s292, 8
        %s294 = scalar_lea.vmem [#allocation3], %s293
        %p295 = scmp.lt.s32.totalorder %s24, 1
        %s296 = scalar_select %p295, %s24, 1
        %p297 = scmp.lt.s32.totalorder %s25, 0
        %s298 = scalar_select %p297, %s25, 0
        %s299 = sadd.s32 %s298, %s296
        %s300 = smul.addr %s299, 8
        %s301 = scalar_lea.vmem %s0, %s300
        %p302 = scmp.lt.s32.totalorder %s24, 1
        %s303 = scalar_select %p302, %s24, 1
        %s304 = smul.addr %s303, 16
        %s305 = smul.addr %s304, 8
        %s306 = scalar_lea.vmem %s1, %s305
        %p307 = scmp.lt.s32.totalorder %s24, 1
        %s308 = scalar_select %p307, %s24, 1
        %s309 = smul.addr %s308, 16
        %s310 = smul.addr %s309, 8
        %s311 = scalar_lea.vmem %s2, %s310
        %v312 = vld [vmem:[%s301] sm:$0xff]
        %v313 = vld [vmem:[%s306] sm:$0xff]
        %v314 = vld [vmem:[%s306 + $0x8] sm:$0xff]
        %v315 = vld [vmem:[%s306 + $0x10] sm:$0xff]
        %v316 = vld [vmem:[%s306 + $0x18] sm:$0xff]
        %v317 = vld [vmem:[%s306 + $0x20] sm:$0xff]
        %v318 = vld [vmem:[%s306 + $0x28] sm:$0xff]
        %v319 = vld [vmem:[%s306 + $0x30] sm:$0xff]
        %v320 = vld [vmem:[%s306 + $0x38] sm:$0xff]
        %v321 = vld [vmem:[%s306 + $0x40] sm:$0xff]
        %v322 = vld [vmem:[%s306 + $0x48] sm:$0xff]
        %v323 = vld [vmem:[%s306 + $0x50] sm:$0xff]
        %v324 = vld [vmem:[%s306 + $0x58] sm:$0xff]
        %v325 = vld [vmem:[%s306 + $0x60] sm:$0xff]
        %v326 = vld [vmem:[%s306 + $0x68] sm:$0xff]
        %v327 = vld [vmem:[%s306 + $0x70] sm:$0xff]
        %v328 = vld [vmem:[%s306 + $0x78] sm:$0xff]
        %v329 = vld [vmem:[%s311] sm:$0xff]
        %v330 = vld [vmem:[%s311 + $0x8] sm:$0xff]
        %v331 = vld [vmem:[%s311 + $0x10] sm:$0xff]
        %v332 = vld [vmem:[%s311 + $0x18] sm:$0xff]
        %v333 = vld [vmem:[%s311 + $0x20] sm:$0xff]
        %v334 = vld [vmem:[%s311 + $0x28] sm:$0xff]
        %v335 = vld [vmem:[%s311 + $0x30] sm:$0xff]
        %v336 = vld [vmem:[%s311 + $0x38] sm:$0xff]
        %v337 = vld [vmem:[%s311 + $0x40] sm:$0xff]
        %v338 = vld [vmem:[%s311 + $0x48] sm:$0xff]
        %v339 = vld [vmem:[%s311 + $0x50] sm:$0xff]
        %v340 = vld [vmem:[%s311 + $0x58] sm:$0xff]
        %v341 = vld [vmem:[%s311 + $0x60] sm:$0xff]
        %v342 = vld [vmem:[%s311 + $0x68] sm:$0xff]
        %v343 = vld [vmem:[%s311 + $0x70] sm:$0xff]
        %v344 = vld [vmem:[%s311 + $0x78] sm:$0xff]
        %v345 = vld [vmem:[%s3] sm:$0xff]
        %v346 = vld [vmem:[%s3 + $0x8] sm:$0xff]
        %v347 = vld [vmem:[%s3 + $0x10] sm:$0xff]
        %v348 = vld [vmem:[%s3 + $0x18] sm:$0xff]
        %vm349 = vcmask 261120
        %v351 = vsel %vm349, %v312, 0
        %353 = vmatpush.msra.mxu0 0.0
        %354 = vmatpush.msra.mxu0 0.0
        %355 = vmatpush.msra.mxu0 0.0
        %356 = vmatpush.msra.mxu0 0.0
        %357 = vmatpush.msra.mxu0 0.0
        %358 = vmatpush.msra.mxu0 0.0
        %359 = vmatpush.msra.mxu0 0.0
        %360 = vmatpush.msra.mxu0 0.0
        %361 = vmatpush.msra.mxu0 0.0
        %362 = vmatpush.msra.mxu0 0.0
        %363 = vmatpush.msra.mxu0 0.0
        %364 = vmatpush.msra.mxu0 0.0
        %365 = vmatpush.msra.mxu0 %v348
        %366 = vmatpush.msra.mxu0 %v347
        %367 = vmatpush.msra.mxu0 %v346
        %368 = vmatpush.msra.mxu0 %v345
        %369 = vmatmul.f32.gmra.mxu0 %v351
        %v370 = vpop.f32.mrf.mxu0
        %v371 = vadd.f32 0.0, %v370
        %372 = vdwg.mxu0
        %v373 = vlaneseq
        %v374 = vand.u32 %v373, 127
        %vm375 = vcmp.lt.s32.totalorder %v374, 8
        %v376 = vsel %vm375, 0.0, -1e+30
        %vm377 = vcmask 130048
        %v379 = vsel %vm377, %v371, 0
        %v382 = vsel %vm377, %v313, 0
        %v385 = vsel %vm377, %v314, 0
        %v388 = vsel %vm377, %v315, 0
        %v391 = vsel %vm377, %v316, 0
        %v394 = vsel %vm377, %v317, 0
        %v397 = vsel %vm377, %v318, 0
        %v400 = vsel %vm377, %v319, 0
        %v403 = vsel %vm377, %v320, 0
        %v406 = vsel %vm377, %v321, 0
        %v409 = vsel %vm377, %v322, 0
        %v412 = vsel %vm377, %v323, 0
        %v415 = vsel %vm377, %v324, 0
        %v418 = vsel %vm377, %v325, 0
        %v421 = vsel %vm377, %v326, 0
        %v424 = vsel %vm377, %v327, 0
        %v427 = vsel %vm377, %v328, 0
        %429 = vmatpush.xpose.msra.mxu0 %v427
        %430 = vmatpush.xpose.msra.mxu0 %v424
        %431 = vmatpush.xpose.msra.mxu0 %v421
        %432 = vmatpush.xpose.msra.mxu0 %v418
        %433 = vmatpush.xpose.msra.mxu0 %v415
        %434 = vmatpush.xpose.msra.mxu0 %v412
        %435 = vmatpush.xpose.msra.mxu0 %v409
        %436 = vmatpush.xpose.msra.mxu0 %v406
        %437 = vmatpush.xpose.msra.mxu0 %v403
        %438 = vmatpush.xpose.msra.mxu0 %v400
        %439 = vmatpush.xpose.msra.mxu0 %v397
        %440 = vmatpush.xpose.msra.mxu0 %v394
        %441 = vmatpush.xpose.msra.mxu0 %v391
        %442 = vmatpush.xpose.msra.mxu0 %v388
        %443 = vmatpush.xpose.msra.mxu0 %v385
        %444 = vmatpush.xpose.msra.mxu0 %v382
        %445 = vmatmul.f32.gmra.mxu0 %v379
        %v446 = vpop.f32.mrf.mxu0
        %v447 = vadd.f32 %v376, %v446
        %448 = vdwg.mxu0
        %449 = vmax.xlane.f32.xlu0 %v447
        %v450 = vpop.xlane.xlu0 %449
        %v451 = vsub.f32 %v447, %v450
        %v452 = vmul.f32 %v451, 1.442695
        %v453 = vpow.pop %v452
        %454 = vadd.xlane.f32.xlu0 %v453
        %v455 = vpop.xlane.xlu0 %454
        %456 = vmatpush.msra.mxu0 %v344
        %457 = vmatpush.msra.mxu0 %v343
        %458 = vmatpush.msra.mxu0 %v342
        %459 = vmatpush.msra.mxu0 %v341
        %460 = vmatpush.msra.mxu0 %v340
        %461 = vmatpush.msra.mxu0 %v339
        %462 = vmatpush.msra.mxu0 %v338
        %463 = vmatpush.msra.mxu0 %v337
        %464 = vmatpush.msra.mxu0 %v336
        %465 = vmatpush.msra.mxu0 %v335
        %466 = vmatpush.msra.mxu0 %v334
        %467 = vmatpush.msra.mxu0 %v333
        %468 = vmatpush.msra.mxu0 %v332
        %469 = vmatpush.msra.mxu0 %v331
        %470 = vmatpush.msra.mxu0 %v330
        %471 = vmatpush.msra.mxu0 %v329
        %472 = vmatmul.f32.gmra.mxu0 %v453
        %v473 = vpop.f32.mrf.mxu0
        %v474 = vadd.f32 0.0, %v473
        %475 = vdwg.mxu0
        %v476 = vrcp.pop %v455
        %v477 = vmul.f32 %v474, %v476
        %478 = vst.msk [vmem:[#allocation2] sm:$0xff] %vm377, %v477
        %479 = vrot.lane.b32.xlu0 %v371, 112
        %v480 = vpop.permute.xlu0 %479
        %481 = vrot.lane.b32.xlu0 %v313, 112
        %v482 = vpop.permute.xlu0 %481
        %483 = vrot.lane.b32.xlu0 %v314, 112
        %v484 = vpop.permute.xlu0 %483
        %485 = vrot.lane.b32.xlu0 %v315, 112
        %v486 = vpop.permute.xlu0 %485
        %487 = vrot.lane.b32.xlu0 %v316, 112
        %v488 = vpop.permute.xlu0 %487
        %489 = vrot.lane.b32.xlu0 %v317, 112
        %v490 = vpop.permute.xlu0 %489
        %491 = vrot.lane.b32.xlu0 %v318, 112
        %v492 = vpop.permute.xlu0 %491
        %493 = vrot.lane.b32.xlu0 %v319, 112
        %v494 = vpop.permute.xlu0 %493
        %495 = vrot.lane.b32.xlu0 %v320, 112
        %v496 = vpop.permute.xlu0 %495
        %497 = vrot.lane.b32.xlu0 %v321, 112
        %v498 = vpop.permute.xlu0 %497
        %499 = vrot.lane.b32.xlu0 %v322, 112
        %v500 = vpop.permute.xlu0 %499
        %501 = vrot.lane.b32.xlu0 %v323, 112
        %v502 = vpop.permute.xlu0 %501
        %503 = vrot.lane.b32.xlu0 %v324, 112
        %v504 = vpop.permute.xlu0 %503
        %505 = vrot.lane.b32.xlu0 %v325, 112
        %v506 = vpop.permute.xlu0 %505
        %507 = vrot.lane.b32.xlu0 %v326, 112
        %v508 = vpop.permute.xlu0 %507
        %509 = vrot.lane.b32.xlu0 %v327, 112
        %v510 = vpop.permute.xlu0 %509
        %511 = vrot.lane.b32.xlu0 %v328, 112
        %v512 = vpop.permute.xlu0 %511
        %v513 = vsel %vm377, %v480, 0
        %v515 = vsel %vm377, %v482, 0
        %v517 = vsel %vm377, %v484, 0
        %v519 = vsel %vm377, %v486, 0
        %v521 = vsel %vm377, %v488, 0
        %v523 = vsel %vm377, %v490, 0
        %v525 = vsel %vm377, %v492, 0
        %v527 = vsel %vm377, %v494, 0
        %v529 = vsel %vm377, %v496, 0
        %v531 = vsel %vm377, %v498, 0
        %v533 = vsel %vm377, %v500, 0
        %v535 = vsel %vm377, %v502, 0
        %v537 = vsel %vm377, %v504, 0
        %v539 = vsel %vm377, %v506, 0
        %v541 = vsel %vm377, %v508, 0
        %v543 = vsel %vm377, %v510, 0
        %v545 = vsel %vm377, %v512, 0
        %547 = vmatpush.xpose.msra.mxu0 %v545
        %548 = vmatpush.xpose.msra.mxu0 %v543
        %549 = vmatpush.xpose.msra.mxu0 %v541
        %550 = vmatpush.xpose.msra.mxu0 %v539
        %551 = vmatpush.xpose.msra.mxu0 %v537
        %552 = vmatpush.xpose.msra.mxu0 %v535
        %553 = vmatpush.xpose.msra.mxu0 %v533
        %554 = vmatpush.xpose.msra.mxu0 %v531
        %555 = vmatpush.xpose.msra.mxu0 %v529
        %556 = vmatpush.xpose.msra.mxu0 %v527
        %557 = vmatpush.xpose.msra.mxu0 %v525
        %558 = vmatpush.xpose.msra.mxu0 %v523
        %559 = vmatpush.xpose.msra.mxu0 %v521
        %560 = vmatpush.xpose.msra.mxu0 %v519
        %561 = vmatpush.xpose.msra.mxu0 %v517
        %562 = vmatpush.xpose.msra.mxu0 %v515
        %563 = vmatmul.f32.gmra.mxu0 %v513
        %v564 = vpop.f32.mrf.mxu0
        %v565 = vadd.f32 %v376, %v564
        %566 = vdwg.mxu0
        %567 = vmax.xlane.f32.xlu0 %v565
        %v568 = vpop.xlane.xlu0 %567
        %v569 = vsub.f32 %v565, %v568
        %v570 = vmul.f32 %v569, 1.442695
        %v571 = vpow.pop %v570
        %572 = vadd.xlane.f32.xlu0 %v571
        %v573 = vpop.xlane.xlu0 %572
        %590 = vrot.lane.b32.xlu0 %v329, 112
        %v591 = vpop.permute.xlu0 %590
        %592 = vrot.lane.b32.xlu0 %v330, 112
        %v593 = vpop.permute.xlu0 %592
        %594 = vrot.lane.b32.xlu0 %v331, 112
        %v595 = vpop.permute.xlu0 %594
        %596 = vrot.lane.b32.xlu0 %v332, 112
        %v597 = vpop.permute.xlu0 %596
        %598 = vrot.lane.b32.xlu0 %v333, 112
        %v599 = vpop.permute.xlu0 %598
        %600 = vrot.lane.b32.xlu0 %v334, 112
        %v601 = vpop.permute.xlu0 %600
        %602 = vrot.lane.b32.xlu0 %v335, 112
        %v603 = vpop.permute.xlu0 %602
        %604 = vrot.lane.b32.xlu0 %v336, 112
        %v605 = vpop.permute.xlu0 %604
        %606 = vrot.lane.b32.xlu0 %v337, 112
        %v607 = vpop.permute.xlu0 %606
        %608 = vrot.lane.b32.xlu0 %v338, 112
        %v609 = vpop.permute.xlu0 %608
        %610 = vrot.lane.b32.xlu0 %v339, 112
        %v611 = vpop.permute.xlu0 %610
        %612 = vrot.lane.b32.xlu0 %v340, 112
        %v613 = vpop.permute.xlu0 %612
        %614 = vrot.lane.b32.xlu0 %v341, 112
        %v615 = vpop.permute.xlu0 %614
        %616 = vrot.lane.b32.xlu0 %v342, 112
        %v617 = vpop.permute.xlu0 %616
        %618 = vrot.lane.b32.xlu0 %v343, 112
        %v619 = vpop.permute.xlu0 %618
        %620 = vrot.lane.b32.xlu0 %v344, 112
        %v621 = vpop.permute.xlu0 %620
        %638 = vmatpush.msra.mxu0 %v621
        %639 = vmatpush.msra.mxu0 %v619
        %640 = vmatpush.msra.mxu0 %v617
        %641 = vmatpush.msra.mxu0 %v615
        %642 = vmatpush.msra.mxu0 %v613
        %643 = vmatpush.msra.mxu0 %v611
        %644 = vmatpush.msra.mxu0 %v609
        %645 = vmatpush.msra.mxu0 %v607
        %646 = vmatpush.msra.mxu0 %v605
        %647 = vmatpush.msra.mxu0 %v603
        %648 = vmatpush.msra.mxu0 %v601
        %649 = vmatpush.msra.mxu0 %v599
        %650 = vmatpush.msra.mxu0 %v597
        %651 = vmatpush.msra.mxu0 %v595
        %652 = vmatpush.msra.mxu0 %v593
        %653 = vmatpush.msra.mxu0 %v591
        %654 = vmatmul.f32.gmra.mxu0 %v571
        %v655 = vpop.f32.mrf.mxu0
        %v656 = vadd.f32 0.0, %v655
        %657 = vdwg.mxu0
        %v658 = vrcp.pop %v573
        %v659 = vmul.f32 %v656, %v658
        %661 = vrot.lane.b32.xlu0 %v659, 16
        %v662 = vpop.permute.xlu0 %661
        %vm664 = vcmask 261248
        %665 = vst.msk [vmem:[#allocation2] sm:$0xff] %vm664, %v662
        %v666 = vld [vmem:[#allocation2] sm:$0xff]
        %v667 = vld [vmem:[%s4] sm:$0xff]
        %v668 = vld [vmem:[%s4 + $0x8] sm:$0xff]
        %v669 = vld [vmem:[%s4 + $0x10] sm:$0xff]
        %v670 = vld [vmem:[%s4 + $0x18] sm:$0xff]
        %v671 = vld [vmem:[%s5] sm:$0x1]
        %v673 = vperm.slane %v671, 0
        %v676 = vsel %vm349, %v666, 0
        %678 = vmatpush.msra.mxu0 0.0
        %679 = vmatpush.msra.mxu0 0.0
        %680 = vmatpush.msra.mxu0 0.0
        %681 = vmatpush.msra.mxu0 0.0
        %682 = vmatpush.msra.mxu0 0.0
        %683 = vmatpush.msra.mxu0 0.0
        %684 = vmatpush.msra.mxu0 0.0
        %685 = vmatpush.msra.mxu0 0.0
        %686 = vmatpush.msra.mxu0 0.0
        %687 = vmatpush.msra.mxu0 0.0
        %688 = vmatpush.msra.mxu0 0.0
        %689 = vmatpush.msra.mxu0 0.0
        %690 = vmatpush.msra.mxu0 %v670
        %691 = vmatpush.msra.mxu0 %v669
        %692 = vmatpush.msra.mxu0 %v668
        %693 = vmatpush.msra.mxu0 %v667
        %694 = vmatmul.f32.gmra.mxu0 %v676
        %v695 = vpop.f32.mrf.mxu0
        %v696 = vadd.f32 %v673, %v695
        %697 = vdwg.mxu0
        %698 = vst.msk [vmem:[%s294] sm:$0xff] %vm349, %v696
        %s699 = sand.u32 %s185, 1
        %s700 = scalar_lea.sflag [#allocation4], %s699
        %s701 = sand.u32 %s185, 1
        %s702 = smul.addr %s701, 8
        %s703 = scalar_lea.vmem [#allocation3], %s702
        // Predicated region
        $region45: #{tpu_custom_call.1} parent=43 // pred_check
          %p704 = pneg %p195
        $region46: #{tpu_custom_call.1} parent=43 // pred_check_branch
          %706 = sbr.rel (%p704) target = $region48
        $region47: #{tpu_custom_call.1} parent=43 // pred_region
          %708 = vsyncadd %s700, 0
          %s709 = sadd.s32 %s25, %s24
          %s710 = smul.addr %s709, 8
          %s711 = scalar_lea.hbm %s6, %s710
          %s713 = sshll.u32 %s703, 4
          %s714 = int_to_ptr.vmem [resolvable:$true] %s713
          %s715 = sshll.u32 %s711, 4
          %s716 = int_to_ptr.hbm [resolvable:$true] %s715
          %718 = dma.vmem_to_hbm [thread:$0]  %s714, 128, %s716, %s700
        $region48: #{tpu_custom_call.1} parent=43 // pred_fallthru
          _
      $region44: #{tpu_custom_call.1} parent=5 // pred_fallthru
        _
      %p719 = scmp.le.s32.totalorder 2, %s15
      // Predicated region
      $region49: #{tpu_custom_call.1} parent=5 // pred_check
        %p720 = pneg %p719
      $region50: #{tpu_custom_call.1} parent=5 // pred_check_branch
        %722 = sbr.rel (%p720) target = $region52
      $region51: #{tpu_custom_call.1} parent=5 // pred_region
        %s723 = ssub.s32 %s15, 2
        // Predicated region
        $region53: #{tpu_custom_call.1} parent=51 // pred_check
          %p724 = pneg %p201
        $region54: #{tpu_custom_call.1} parent=51 // pred_check_branch
          %726 = sbr.rel (%p724) target = $region56
        $region55: #{tpu_custom_call.1} parent=51 // pred_region
          %s727 = sand.u32 %s186, 1
          %s728 = scalar_lea.sflag [#allocation4], %s727
          %s729 = sand.u32 %s186, 1
          %s730 = smul.addr %s729, 8
          %s731 = scalar_lea.vmem [#allocation3], %s730
          %733 = dma.done %s728, 128
        $region56: #{tpu_custom_call.1} parent=51 // pred_fallthru
          _
      $region52: #{tpu_custom_call.1} parent=5 // pred_fallthru
        _
    $region6: #{tpu_custom_call.1} parent=1 // loop_footer
      %s19 = sadd.s32 1, %s15
    $region7: #{tpu_custom_call.1} parent=1 // loop_footer_branch
      %14 = sbr.rel target = $region3
    $region8: #{tpu_custom_call.1} parent=1 // loop_exit
      _
    %734 = vsyncpa [#allocation4], 1
    %s735 = scalar_lea.sflag [#allocation4], 1
    %736 = vsyncpa %s735, 1

</llo_original>
